<compile_context>
chip_gen: v7x
topology: tpu7x:2x2x1
jax: 0.10.0
libtpu: 0.0.40
codegen_flags: <defaults>
</compile_context>

<pallas_src>
import jax
import jax.numpy as jnp
from jax.experimental import pallas as pl
from jax.experimental.pallas import tpu as pltpu


EPS = 1e-5
DIMS = [784, 200, 100, 60, 30, 10]
PAD_OUT = [256, 128, 128, 128, 128]   # padded output dims per layer (lane multiples)


# --------------------------------------------------------------------------- #
# Kernel
# --------------------------------------------------------------------------- #
def _mlp_kernel(x_ref, w1_ref, w2_ref, w3_ref, w4_ref, w5_ref, vec_ref,
                out_ref, z1_ref):
    i = pl.program_id(0)
    nb = pl.num_programs(0)
    tb = x_ref.shape[0]          # batch tile (static)
    b = z1_ref.shape[0]          # full batch (static)
    inv_b = 1.0 / float(b)

    # ---- Layer 1, this batch tile: bf16 MXU matmul, f32 accumulate ---------
    # The linear bias is omitted on purpose: training-mode BatchNorm subtracts
    # the batch mean, so any per-feature constant offset cancels exactly.
    x_tile = x_ref[...].astype(jnp.bfloat16)
    z_tile = jnp.dot(x_tile, w1_ref[...], preferred_element_type=jnp.float32)
    row0 = pl.multiple_of(i * tb, 8)
    z1_ref[pl.ds(row0, tb), :] = z_tile

    # ---- Last grid step: full-batch BN + layers 2-5 + log_softmax ----------
    @pl.when(i == nb - 1)
    def _():
        def bn_tanh(z, g, be):
            # Training-mode BatchNorm folded to a single affine (scale/shift).
            # sigmoid(zn) = 0.5*tanh(0.5*zn) + 0.5; the outer 0.5*t+0.5 is
            # pre-folded into the *consumer* weights/bias (pack_params), so the
            # activation emitted here is t = tanh(0.5*zn), computed as
            # tanh(z*scale + shift) with the 0.5 folded into scale/shift.
            mean = jnp.sum(z, axis=0, keepdims=True) * inv_b
            mean_sq = jnp.sum(z * z, axis=0, keepdims=True) * inv_b
            var = jnp.maximum(mean_sq - mean * mean, 0.0)
            scale = (0.5 * g) * jax.lax.rsqrt(var + EPS)
            shift = 0.5 * be - mean * scale
            return jnp.tanh(z * scale + shift).astype(jnp.bfloat16)

        h1 = bn_tanh(z1_ref[...], vec_ref[0:1, :], vec_ref[1:2, :])
        z2 = jnp.dot(h1, w2_ref[...], preferred_element_type=jnp.float32)
        h2 = bn_tanh(z2, vec_ref[2:3, 0:128], vec_ref[3:4, 0:128])
        z3 = jnp.dot(h2, w3_ref[...], preferred_element_type=jnp.float32)
        h3 = bn_tanh(z3, vec_ref[4:5, 0:128], vec_ref[5:6, 0:128])
        z4 = jnp.dot(h3, w4_ref[...], preferred_element_type=jnp.float32)
        h4 = bn_tanh(z4, vec_ref[6:7, 0:128], vec_ref[7:8, 0:128])

        # Head: folded bias; padded lanes carry -1e30 so softmax ignores them.
        logits = jnp.dot(h4, w5_ref[...], preferred_element_type=jnp.float32)
        logits = logits + vec_ref[8:9, 0:128]

        m = jnp.max(logits, axis=1, keepdims=True)
        s = logits - m
        lse = jnp.log(jnp.sum(jnp.exp(s), axis=1, keepdims=True))
        out_ref[...] = s - lse


# --------------------------------------------------------------------------- #
# Parameters
# --------------------------------------------------------------------------- #
def init_params(key):
    """PyTorch-default-style init (uniform +/- 1/sqrt(fan_in)); BN gamma=1,
    beta=0.  Everything stays f32 and un-padded (logical params)."""
    params = []
    keys = jax.random.split(key, 2 * (len(DIMS) - 1))
    for i in range(len(DIMS) - 1):
        fan_in, fan_out = DIMS[i], DIMS[i + 1]
        bound = 1.0 / (float(fan_in) ** 0.5)
        w = jax.random.uniform(keys[2 * i], (fan_in, fan_out), jnp.float32,
                               minval=-bound, maxval=bound)
        bias = jax.random.uniform(keys[2 * i + 1], (1, fan_out), jnp.float32,
                                  minval=-bound, maxval=bound)
        params += [w, bias]
        if i < len(DIMS) - 2:  # layers 1-4 have BatchNorm
            params.append(jnp.ones((1, fan_out), jnp.float32))   # gamma
            params.append(jnp.zeros((1, fan_out), jnp.float32))  # beta
    return params


def pack_params(params):
    """Fold + pad + pack the logical params for the kernel (one-time, off the
    hot path).  Returns (w1p, w2p, w3p, w4p, w5p, vec_slab).

    * Weights are zero-padded to lane-multiple output dims (K=784 kept as-is)
      and stored bf16.
    * sigmoid(x) = 0.5*tanh(0.5*x) + 0.5, so for every consumer of a hidden
      activation:  h @ W + b = t @ (0.5*W) + (b + 0.5*colsum(W)).  The 0.5*W is
      baked into w2..w5; the bias part is only needed for the head (hidden-layer
      biases cancel inside training-mode BatchNorm).
    * The (16, 256) vec slab packs [g1,be1,g2,be2,g3,be3,g4,be4,head_bias];
      head-bias lanes 10..127 are -1e30 so padded logits vanish under softmax."""
    (w1, _b1, g1, be1,
     w2, _b2, g2, be2,
     w3, _b3, g3, be3,
     w4, _b4, g4, be4,
     w5, b5) = params

    def pad2(w, rows, cols):
        return jnp.pad(w, ((0, rows - w.shape[0]), (0, cols - w.shape[1])))

    w1p = pad2(w1, DIMS[0], PAD_OUT[0]).astype(jnp.bfloat16)
    w2p = pad2(0.5 * w2, PAD_OUT[0], PAD_OUT[1]).astype(jnp.bfloat16)
    w3p = pad2(0.5 * w3, PAD_OUT[1], PAD_OUT[2]).astype(jnp.bfloat16)
    w4p = pad2(0.5 * w4, PAD_OUT[2], PAD_OUT[3]).astype(jnp.bfloat16)
    w5p = pad2(0.5 * w5, PAD_OUT[3], PAD_OUT[4]).astype(jnp.bfloat16)
    b5f = b5 + 0.5 * jnp.sum(w5, axis=0, keepdims=True)          # (1, 10)

    vec = jnp.zeros((16, 256), jnp.float32)
    vec = vec.at[0, :200].set(g1[0]).at[1, :200].set(be1[0])
    vec = vec.at[2, :100].set(g2[0]).at[3, :100].set(be2[0])
    vec = vec.at[4, :60].set(g3[0]).at[5, :60].set(be3[0])
    vec = vec.at[6, :30].set(g4[0]).at[7, :30].set(be4[0])
    head_bias = jnp.full((128,), -1e30, jnp.float32).at[:10].set(b5f[0])
    vec = vec.at[8, :128].set(head_bias)
    return (w1p, w2p, w3p, w4p, w5p, vec)


# --------------------------------------------------------------------------- #
# Wrapper
# --------------------------------------------------------------------------- #
def _pick_batch_tile(batch):
    for tb in (512, 256, 128, 64, 32, 16, 8):
        if batch % tb == 0 and batch // tb >= 2:
            return tb
    return batch   # single-tile fallback (grid of 1)


def _vmem_limit_bytes(batch, tb):
    try:
        cap = int(pltpu.get_tpu_info().vmem_capacity_bytes)
    except Exception:
        cap = 64 << 20              # assume smallest physical VMEM (v7x per-TC)
    limit = max(cap - (8 << 20), cap // 2)   # leave headroom below physical
    weight_bytes = 2 * 2 * (784 * 256 + 256 * 128 + 3 * 128 * 128)  # bf16, x2 buf
    est = (2 * tb * 784 * 4                      # x tile double buffer (f32)
           + weight_bytes + 2 * 16 * 256 * 4     # weights + vec slab
           + batch * 256 * 4                     # z1 scratch (full batch)
           + batch * 128 * 4                     # resident output block
           + batch * (256 * 2 + 256 * 4 + 6 * 128 * 4)  # last-step intermediates
           + (4 << 20))                          # compiler temporaries
    if est > limit:
        raise ValueError(
            f"batch {batch} needs ~{est >> 20} MiB VMEM > {limit >> 20} MiB "
            "available; split the batch across multiple calls")
    return limit


def minst7_forward(x, packed):
    """x: (B, 784) float32 (B >= 2 for training-mode BatchNorm).
    packed: output of pack_params(init_params(...)).
    Returns (B, 10) log-probabilities."""
    w1p, w2p, w3p, w4p, w5p, vec = packed
    batch = x.shape[0]
    tb = _pick_batch_tile(batch)
    nb = batch // tb

    grid_spec = pltpu.PrefetchScalarGridSpec(
        num_scalar_prefetch=0,
        grid=(nb,),
        in_specs=[
            pl.BlockSpec((tb, 784), lambda i: (i, 0)),      # x: pipelined tiles
            pl.BlockSpec((784, 256), lambda i: (0, 0)),     # w1 (resident)
            pl.BlockSpec((256, 128), lambda i: (0, 0)),     # w2
            pl.BlockSpec((128, 128), lambda i: (0, 0)),     # w3
            pl.BlockSpec((128, 128), lambda i: (0, 0)),     # w4
            pl.BlockSpec((128, 128), lambda i: (0, 0)),     # w5
            pl.BlockSpec((16, 256), lambda i: (0, 0)),      # packed vectors
        ],
        out_specs=pl.BlockSpec((batch, 128), lambda i: (0, 0)),  # resident output
        scratch_shapes=[pltpu.VMEM((batch, 256), jnp.float32)],  # z1 (full batch)
    )

    flops = 2 * batch * sum(DIMS[i] * DIMS[i + 1] for i in range(5))
    transcendentals = batch * (sum(DIMS[1:5]) + DIMS[-1])
    param_bytes = sum(int(p.size) * p.dtype.itemsize
                      for p in (w1p, w2p, w3p, w4p, w5p, vec))
    bytes_accessed = param_bytes + batch * (784 + 128) * 4

    out = pl.pallas_call(
        _mlp_kernel,
        grid_spec=grid_spec,
        out_shape=jax.ShapeDtypeStruct((batch, 128), jnp.float32),
        compiler_params=pltpu.CompilerParams(
            dimension_semantics=("arbitrary",),   # cross-step dep via z1 scratch
            vmem_limit_bytes=_vmem_limit_bytes(batch, tb)),
        cost_estimate=pl.CostEstimate(flops=flops,
                                      transcendentals=transcendentals,
                                      bytes_accessed=bytes_accessed),
    )(x, w1p, w2p, w3p, w4p, w5p, vec)
    return out[:, :DIMS[-1]]


# --------------------------------------------------------------------------- #
# Pure-JAX reference (exact f32 spec semantics) for correctness checking
# --------------------------------------------------------------------------- #
def reference_forward(x, params):
    h = x
    idx = 0
    for _ in range(4):
        w, bias, g, be = params[idx], params[idx + 1], params[idx + 2], params[idx + 3]
        idx += 4
        z = h @ w + bias
        mean = jnp.mean(z, axis=0, keepdims=True)
        var = jnp.mean((z - mean) ** 2, axis=0, keepdims=True)
        h = jax.nn.sigmoid((z - mean) / jnp.sqrt(var + EPS) * g + be)
    w, bias = params[idx], params[idx + 1]
    return jax.nn.log_softmax(h @ w + bias, axis=1)


if __name__ == "__main__":
    key = jax.random.PRNGKey(0)
    k_x, k_p = jax.random.split(key)

    # Small demo batch (>1 required for training-mode BatchNorm). For production
    # throughput use B = 1024-4096 per call; the kernel supports it unchanged.
    B = 32
    x = jax.random.normal(k_x, (B, 784), dtype=jnp.float32)

    params = init_params(k_p)
    packed = pack_params(params)          # one-time fold/pad/pack, off hot path

    out = jax.block_until_ready(minst7_forward(x, packed))
    ref = reference_forward(x, params)

    assert out.shape == (B, 10)
    max_err = float(jnp.max(jnp.abs(out - ref)))
    # bf16 MXU operands vs f32 reference -> loosened tolerance (per review).
    assert max_err < 5e-2, f"mismatch vs JAX reference: max abs err {max_err}"

    print("KERNEL_OK")
</pallas_src>

<mosaic_0001>
module attributes {stable_mosaic.version = 11 : i64} {
  func.func @_mlp_kernel(%arg0: i32, %arg1: memref<16x784xf32, #tpu.memory_space<vmem>>, %arg2: memref<784x256xbf16, #tpu.memory_space<vmem>>, %arg3: memref<256x128xbf16, #tpu.memory_space<vmem>>, %arg4: memref<128x128xbf16, #tpu.memory_space<vmem>>, %arg5: memref<128x128xbf16, #tpu.memory_space<vmem>>, %arg6: memref<128x128xbf16, #tpu.memory_space<vmem>>, %arg7: memref<16x256xf32, #tpu.memory_space<vmem>>, %arg8: memref<32x128xf32, #tpu.memory_space<vmem>>, %arg9: memref<32x256xf32, #tpu.memory_space<vmem>>) attributes {dimension_semantics = [#tpu.dimension_semantics<arbitrary>], iteration_bounds = array<i64: 2>, scalar_prefetch = 0 : i64, scratch_operands = 1 : i64, tpu.core_type = #tpu.core_type<tc>, window_params = [{transform_indices = @transform_0, window_bounds = array<i64: 16, 784>}, {pipeline_mode = #tpu.pipeline_mode<synchronous>, transform_indices = @transform_1, window_bounds = array<i64: 784, 256>}, {pipeline_mode = #tpu.pipeline_mode<synchronous>, transform_indices = @transform_2, window_bounds = array<i64: 256, 128>}, {pipeline_mode = #tpu.pipeline_mode<synchronous>, transform_indices = @transform_3, window_bounds = array<i64: 128, 128>}, {pipeline_mode = #tpu.pipeline_mode<synchronous>, transform_indices = @transform_4, window_bounds = array<i64: 128, 128>}, {pipeline_mode = #tpu.pipeline_mode<synchronous>, transform_indices = @transform_5, window_bounds = array<i64: 128, 128>}, {pipeline_mode = #tpu.pipeline_mode<synchronous>, transform_indices = @transform_6, window_bounds = array<i64: 16, 256>}, {pipeline_mode = #tpu.pipeline_mode<synchronous>, transform_indices = @transform_7, window_bounds = array<i64: 32, 128>}]} {
    %c0 = arith.constant 0 : index
    %c0_0 = arith.constant 0 : index
    %0 = vector.load %arg1[%c0, %c0_0] : memref<16x784xf32, #tpu.memory_space<vmem>>, vector<16x784xf32>
    %1 = arith.truncf %0 : vector<16x784xf32> to vector<16x784xbf16>
    %c0_1 = arith.constant 0 : index
    %c0_2 = arith.constant 0 : index
    %2 = vector.load %arg2[%c0_1, %c0_2] : memref<784x256xbf16, #tpu.memory_space<vmem>>, vector<784x256xbf16>
    %cst = arith.constant dense<0.000000e+00> : vector<16x256xf32>
    %3 = tpu.matmul %1, %2, %cst {dimension_numbers = #tpu.dot_dimension_numbers<[1], [0], [0], [1], [0, 0, 1, 1], [], []>} : vector<16x784xbf16>, vector<784x256xbf16>, vector<16x256xf32> -> vector<16x256xf32>
    %c16_i32 = arith.constant 16 : i32
    %4 = arith.muli %arg0, %c16_i32 : i32
    %5 = tpu.assume_multiple %4, 8 : i32
    %6 = arith.index_cast %5 : i32 to index
    %c0_3 = arith.constant 0 : index
    %7 = vector.load %arg9[%6, %c0_3] : memref<32x256xf32, #tpu.memory_space<vmem>>, vector<16x256xf32>
    tpu.vector_store %arg9[%6, %c0_3], %3 {strides = array<i32>} : memref<32x256xf32, #tpu.memory_space<vmem>>, vector<16x256xf32>,
    %c1_i32 = arith.constant 1 : i32
    %8 = arith.cmpi eq, %arg0, %c1_i32 : i32
    %9 = arith.extui %8 : i1 to i32
    %c0_i32 = arith.constant 0 : i32
    %10 = arith.cmpi ne, %9, %c0_i32 : i32
    scf.if %10 {
      %c0_4 = arith.constant 0 : index
      %c0_5 = arith.constant 0 : index
      %11 = vector.load %arg9[%c0_4, %c0_5] : memref<32x256xf32, #tpu.memory_space<vmem>>, vector<32x256xf32>
      %c0_6 = arith.constant 0 : index
      %c0_7 = arith.constant 0 : index
      %12 = vector.load %arg7[%c0_6, %c0_7] : memref<16x256xf32, #tpu.memory_space<vmem>>, vector<1x256xf32>
      %c1 = arith.constant 1 : index
      %c0_8 = arith.constant 0 : index
      %13 = vector.load %arg7[%c1, %c0_8] : memref<16x256xf32, #tpu.memory_space<vmem>>, vector<1x256xf32>
      %cst_9 = arith.constant dense<0.000000e+00> : vector<256xf32>
      %14 = vector.multi_reduction <add>, %11, %cst_9 [0] : vector<32x256xf32> to vector<256xf32>
      %15 = vector.shape_cast %14 : vector<256xf32> to vector<1x256xf32>
      %cst_10 = arith.constant 3.125000e-02 : f32
      %16 = vector.broadcast %cst_10 : f32 to vector<1x256xf32>
      %17 = arith.mulf %15, %16 : vector<1x256xf32>
      %18 = arith.mulf %11, %11 : vector<32x256xf32>
      %cst_11 = arith.constant dense<0.000000e+00> : vector<256xf32>
      %19 = vector.multi_reduction <add>, %18, %cst_11 [0] : vector<32x256xf32> to vector<256xf32>
      %20 = vector.shape_cast %19 : vector<256xf32> to vector<1x256xf32>
      %cst_12 = arith.constant 3.125000e-02 : f32
      %21 = vector.broadcast %cst_12 : f32 to vector<1x256xf32>
      %22 = arith.mulf %20, %21 : vector<1x256xf32>
      %23 = arith.mulf %17, %17 : vector<1x256xf32>
      %24 = arith.subf %22, %23 : vector<1x256xf32>
      %cst_13 = arith.constant 0.000000e+00 : f32
      %25 = vector.broadcast %cst_13 : f32 to vector<1x256xf32>
      %26 = arith.maximumf %24, %25 : vector<1x256xf32>
      %cst_14 = arith.constant 5.000000e-01 : f32
      %27 = vector.broadcast %cst_14 : f32 to vector<1x256xf32>
      %28 = arith.mulf %27, %12 : vector<1x256xf32>
      %cst_15 = arith.constant 9.99999974E-6 : f32
      %29 = vector.broadcast %cst_15 : f32 to vector<1x256xf32>
      %30 = arith.addf %26, %29 : vector<1x256xf32>
      %31 = math.rsqrt %30 : vector<1x256xf32>
      %32 = arith.mulf %28, %31 : vector<1x256xf32>
      %cst_16 = arith.constant 5.000000e-01 : f32
      %33 = vector.broadcast %cst_16 : f32 to vector<1x256xf32>
      %34 = arith.mulf %33, %13 : vector<1x256xf32>
      %35 = arith.mulf %17, %32 : vector<1x256xf32>
      %36 = arith.subf %34, %35 : vector<1x256xf32>
      %37 = vector.broadcast %32 : vector<1x256xf32> to vector<32x256xf32>
      %38 = arith.mulf %11, %37 : vector<32x256xf32>
      %39 = vector.broadcast %36 : vector<1x256xf32> to vector<32x256xf32>
      %40 = arith.addf %38, %39 : vector<32x256xf32>
      %41 = math.tanh %40 : vector<32x256xf32>
      %42 = arith.truncf %41 : vector<32x256xf32> to vector<32x256xbf16>
      %c0_17 = arith.constant 0 : index
      %c0_18 = arith.constant 0 : index
      %43 = vector.load %arg3[%c0_17, %c0_18] : memref<256x128xbf16, #tpu.memory_space<vmem>>, vector<256x128xbf16>
      %cst_19 = arith.constant dense<0.000000e+00> : vector<32x128xf32>
      %44 = tpu.matmul %42, %43, %cst_19 {dimension_numbers = #tpu.dot_dimension_numbers<[1], [0], [0], [1], [0, 0, 1, 1], [], []>} : vector<32x256xbf16>, vector<256x128xbf16>, vector<32x128xf32> -> vector<32x128xf32>
      %c2 = arith.constant 2 : index
      %c0_20 = arith.constant 0 : index
      %45 = vector.load %arg7[%c2, %c0_20] : memref<16x256xf32, #tpu.memory_space<vmem>>, vector<1x128xf32>
      %c3 = arith.constant 3 : index
      %c0_21 = arith.constant 0 : index
      %46 = vector.load %arg7[%c3, %c0_21] : memref<16x256xf32, #tpu.memory_space<vmem>>, vector<1x128xf32>
      %cst_22 = arith.constant dense<0.000000e+00> : vector<128xf32>
      %47 = vector.multi_reduction <add>, %44, %cst_22 [0] : vector<32x128xf32> to vector<128xf32>
      %48 = vector.shape_cast %47 : vector<128xf32> to vector<1x128xf32>
      %cst_23 = arith.constant 3.125000e-02 : f32
      %49 = vector.broadcast %cst_23 : f32 to vector<1x128xf32>
      %50 = arith.mulf %48, %49 : vector<1x128xf32>
      %51 = arith.mulf %44, %44 : vector<32x128xf32>
      %cst_24 = arith.constant dense<0.000000e+00> : vector<128xf32>
      %52 = vector.multi_reduction <add>, %51, %cst_24 [0] : vector<32x128xf32> to vector<128xf32>
      %53 = vector.shape_cast %52 : vector<128xf32> to vector<1x128xf32>
      %cst_25 = arith.constant 3.125000e-02 : f32
      %54 = vector.broadcast %cst_25 : f32 to vector<1x128xf32>
      %55 = arith.mulf %53, %54 : vector<1x128xf32>
      %56 = arith.mulf %50, %50 : vector<1x128xf32>
      %57 = arith.subf %55, %56 : vector<1x128xf32>
      %cst_26 = arith.constant 0.000000e+00 : f32
      %58 = vector.broadcast %cst_26 : f32 to vector<1x128xf32>
      %59 = arith.maximumf %57, %58 : vector<1x128xf32>
      %cst_27 = arith.constant 5.000000e-01 : f32
      %60 = vector.broadcast %cst_27 : f32 to vector<1x128xf32>
      %61 = arith.mulf %60, %45 : vector<1x128xf32>
      %cst_28 = arith.constant 9.99999974E-6 : f32
      %62 = vector.broadcast %cst_28 : f32 to vector<1x128xf32>
      %63 = arith.addf %59, %62 : vector<1x128xf32>
      %64 = math.rsqrt %63 : vector<1x128xf32>
      %65 = arith.mulf %61, %64 : vector<1x128xf32>
      %cst_29 = arith.constant 5.000000e-01 : f32
      %66 = vector.broadcast %cst_29 : f32 to vector<1x128xf32>
      %67 = arith.mulf %66, %46 : vector<1x128xf32>
      %68 = arith.mulf %50, %65 : vector<1x128xf32>
      %69 = arith.subf %67, %68 : vector<1x128xf32>
      %70 = vector.broadcast %65 : vector<1x128xf32> to vector<32x128xf32>
      %71 = arith.mulf %44, %70 : vector<32x128xf32>
      %72 = vector.broadcast %69 : vector<1x128xf32> to vector<32x128xf32>
      %73 = arith.addf %71, %72 : vector<32x128xf32>
      %74 = math.tanh %73 : vector<32x128xf32>
      %75 = arith.truncf %74 : vector<32x128xf32> to vector<32x128xbf16>
      %c0_30 = arith.constant 0 : index
      %c0_31 = arith.constant 0 : index
      %76 = vector.load %arg4[%c0_30, %c0_31] : memref<128x128xbf16, #tpu.memory_space<vmem>>, vector<128x128xbf16>
      %cst_32 = arith.constant dense<0.000000e+00> : vector<32x128xf32>
      %77 = tpu.matmul %75, %76, %cst_32 {dimension_numbers = #tpu.dot_dimension_numbers<[1], [0], [0], [1], [0, 0, 1, 1], [], []>} : vector<32x128xbf16>, vector<128x128xbf16>, vector<32x128xf32> -> vector<32x128xf32>
      %c4 = arith.constant 4 : index
      %c0_33 = arith.constant 0 : index
      %78 = vector.load %arg7[%c4, %c0_33] : memref<16x256xf32, #tpu.memory_space<vmem>>, vector<1x128xf32>
      %c5 = arith.constant 5 : index
      %c0_34 = arith.constant 0 : index
      %79 = vector.load %arg7[%c5, %c0_34] : memref<16x256xf32, #tpu.memory_space<vmem>>, vector<1x128xf32>
      %cst_35 = arith.constant dense<0.000000e+00> : vector<128xf32>
      %80 = vector.multi_reduction <add>, %77, %cst_35 [0] : vector<32x128xf32> to vector<128xf32>
      %81 = vector.shape_cast %80 : vector<128xf32> to vector<1x128xf32>
      %cst_36 = arith.constant 3.125000e-02 : f32
      %82 = vector.broadcast %cst_36 : f32 to vector<1x128xf32>
      %83 = arith.mulf %81, %82 : vector<1x128xf32>
      %84 = arith.mulf %77, %77 : vector<32x128xf32>
      %cst_37 = arith.constant dense<0.000000e+00> : vector<128xf32>
      %85 = vector.multi_reduction <add>, %84, %cst_37 [0] : vector<32x128xf32> to vector<128xf32>
      %86 = vector.shape_cast %85 : vector<128xf32> to vector<1x128xf32>
      %cst_38 = arith.constant 3.125000e-02 : f32
      %87 = vector.broadcast %cst_38 : f32 to vector<1x128xf32>
      %88 = arith.mulf %86, %87 : vector<1x128xf32>
      %89 = arith.mulf %83, %83 : vector<1x128xf32>
      %90 = arith.subf %88, %89 : vector<1x128xf32>
      %cst_39 = arith.constant 0.000000e+00 : f32
      %91 = vector.broadcast %cst_39 : f32 to vector<1x128xf32>
      %92 = arith.maximumf %90, %91 : vector<1x128xf32>
      %cst_40 = arith.constant 5.000000e-01 : f32
      %93 = vector.broadcast %cst_40 : f32 to vector<1x128xf32>
      %94 = arith.mulf %93, %78 : vector<1x128xf32>
      %cst_41 = arith.constant 9.99999974E-6 : f32
      %95 = vector.broadcast %cst_41 : f32 to vector<1x128xf32>
      %96 = arith.addf %92, %95 : vector<1x128xf32>
      %97 = math.rsqrt %96 : vector<1x128xf32>
      %98 = arith.mulf %94, %97 : vector<1x128xf32>
      %cst_42 = arith.constant 5.000000e-01 : f32
      %99 = vector.broadcast %cst_42 : f32 to vector<1x128xf32>
      %100 = arith.mulf %99, %79 : vector<1x128xf32>
      %101 = arith.mulf %83, %98 : vector<1x128xf32>
      %102 = arith.subf %100, %101 : vector<1x128xf32>
      %103 = vector.broadcast %98 : vector<1x128xf32> to vector<32x128xf32>
      %104 = arith.mulf %77, %103 : vector<32x128xf32>
      %105 = vector.broadcast %102 : vector<1x128xf32> to vector<32x128xf32>
      %106 = arith.addf %104, %105 : vector<32x128xf32>
      %107 = math.tanh %106 : vector<32x128xf32>
      %108 = arith.truncf %107 : vector<32x128xf32> to vector<32x128xbf16>
      %c0_43 = arith.constant 0 : index
      %c0_44 = arith.constant 0 : index
      %109 = vector.load %arg5[%c0_43, %c0_44] : memref<128x128xbf16, #tpu.memory_space<vmem>>, vector<128x128xbf16>
      %cst_45 = arith.constant dense<0.000000e+00> : vector<32x128xf32>
      %110 = tpu.matmul %108, %109, %cst_45 {dimension_numbers = #tpu.dot_dimension_numbers<[1], [0], [0], [1], [0, 0, 1, 1], [], []>} : vector<32x128xbf16>, vector<128x128xbf16>, vector<32x128xf32> -> vector<32x128xf32>
      %c6 = arith.constant 6 : index
      %c0_46 = arith.constant 0 : index
      %111 = vector.load %arg7[%c6, %c0_46] : memref<16x256xf32, #tpu.memory_space<vmem>>, vector<1x128xf32>
      %c7 = arith.constant 7 : index
      %c0_47 = arith.constant 0 : index
      %112 = vector.load %arg7[%c7, %c0_47] : memref<16x256xf32, #tpu.memory_space<vmem>>, vector<1x128xf32>
      %cst_48 = arith.constant dense<0.000000e+00> : vector<128xf32>
      %113 = vector.multi_reduction <add>, %110, %cst_48 [0] : vector<32x128xf32> to vector<128xf32>
      %114 = vector.shape_cast %113 : vector<128xf32> to vector<1x128xf32>
      %cst_49 = arith.constant 3.125000e-02 : f32
      %115 = vector.broadcast %cst_49 : f32 to vector<1x128xf32>
      %116 = arith.mulf %114, %115 : vector<1x128xf32>
      %117 = arith.mulf %110, %110 : vector<32x128xf32>
      %cst_50 = arith.constant dense<0.000000e+00> : vector<128xf32>
      %118 = vector.multi_reduction <add>, %117, %cst_50 [0] : vector<32x128xf32> to vector<128xf32>
      %119 = vector.shape_cast %118 : vector<128xf32> to vector<1x128xf32>
      %cst_51 = arith.constant 3.125000e-02 : f32
      %120 = vector.broadcast %cst_51 : f32 to vector<1x128xf32>
      %121 = arith.mulf %119, %120 : vector<1x128xf32>
      %122 = arith.mulf %116, %116 : vector<1x128xf32>
      %123 = arith.subf %121, %122 : vector<1x128xf32>
      %cst_52 = arith.constant 0.000000e+00 : f32
      %124 = vector.broadcast %cst_52 : f32 to vector<1x128xf32>
      %125 = arith.maximumf %123, %124 : vector<1x128xf32>
      %cst_53 = arith.constant 5.000000e-01 : f32
      %126 = vector.broadcast %cst_53 : f32 to vector<1x128xf32>
      %127 = arith.mulf %126, %111 : vector<1x128xf32>
      %cst_54 = arith.constant 9.99999974E-6 : f32
      %128 = vector.broadcast %cst_54 : f32 to vector<1x128xf32>
      %129 = arith.addf %125, %128 : vector<1x128xf32>
      %130 = math.rsqrt %129 : vector<1x128xf32>
      %131 = arith.mulf %127, %130 : vector<1x128xf32>
      %cst_55 = arith.constant 5.000000e-01 : f32
      %132 = vector.broadcast %cst_55 : f32 to vector<1x128xf32>
      %133 = arith.mulf %132, %112 : vector<1x128xf32>
      %134 = arith.mulf %116, %131 : vector<1x128xf32>
      %135 = arith.subf %133, %134 : vector<1x128xf32>
      %136 = vector.broadcast %131 : vector<1x128xf32> to vector<32x128xf32>
      %137 = arith.mulf %110, %136 : vector<32x128xf32>
      %138 = vector.broadcast %135 : vector<1x128xf32> to vector<32x128xf32>
      %139 = arith.addf %137, %138 : vector<32x128xf32>
      %140 = math.tanh %139 : vector<32x128xf32>
      %141 = arith.truncf %140 : vector<32x128xf32> to vector<32x128xbf16>
      %c0_56 = arith.constant 0 : index
      %c0_57 = arith.constant 0 : index
      %142 = vector.load %arg6[%c0_56, %c0_57] : memref<128x128xbf16, #tpu.memory_space<vmem>>, vector<128x128xbf16>
      %cst_58 = arith.constant dense<0.000000e+00> : vector<32x128xf32>
      %143 = tpu.matmul %141, %142, %cst_58 {dimension_numbers = #tpu.dot_dimension_numbers<[1], [0], [0], [1], [0, 0, 1, 1], [], []>} : vector<32x128xbf16>, vector<128x128xbf16>, vector<32x128xf32> -> vector<32x128xf32>
      %c8 = arith.constant 8 : index
      %c0_59 = arith.constant 0 : index
      %144 = vector.load %arg7[%c8, %c0_59] : memref<16x256xf32, #tpu.memory_space<vmem>>, vector<1x128xf32>
      %145 = vector.broadcast %144 : vector<1x128xf32> to vector<32x128xf32>
      %146 = arith.addf %143, %145 : vector<32x128xf32>
      %cst_60 = arith.constant dense<0xFF800000> : vector<32xf32>
      %147 = vector.multi_reduction <maximumf>, %146, %cst_60 [1] : vector<32x128xf32> to vector<32xf32>
      %148 = vector.shape_cast %147 : vector<32xf32> to vector<32x1xf32>
      %149 = vector.broadcast %148 : vector<32x1xf32> to vector<32x128xf32>
      %150 = arith.subf %146, %149 : vector<32x128xf32>
      %151 = math.exp %150 : vector<32x128xf32>
      %cst_61 = arith.constant dense<0.000000e+00> : vector<32xf32>
      %152 = vector.multi_reduction <add>, %151, %cst_61 [1] : vector<32x128xf32> to vector<32xf32>
      %153 = vector.shape_cast %152 : vector<32xf32> to vector<32x1xf32>
      %154 = math.log %153 : vector<32x1xf32>
      %155 = vector.broadcast %154 : vector<32x1xf32> to vector<32x128xf32>
      %156 = arith.subf %150, %155 : vector<32x128xf32>
      %c0_62 = arith.constant 0 : index
      %c0_63 = arith.constant 0 : index
      %157 = vector.load %arg8[%c0_62, %c0_63] : memref<32x128xf32, #tpu.memory_space<vmem>>, vector<32x128xf32>
      tpu.vector_store %arg8[%c0_62, %c0_63], %156 {strides = array<i32>} : memref<32x128xf32, #tpu.memory_space<vmem>>, vector<32x128xf32>,
    } else {
    }
    return
  }
  func.func @transform_0(%arg0: i32) -> (i32, i32) {
    %c0_i32 = arith.constant 0 : i32
    %c0_i32_0 = arith.constant 0 : i32
    return %arg0, %c0_i32 : i32, i32
  }
  func.func @transform_1(%arg0: i32) -> (i32, i32) {
    %c0_i32 = arith.constant 0 : i32
    %c0_i32_0 = arith.constant 0 : i32
    %c0_i32_1 = arith.constant 0 : i32
    return %c0_i32, %c0_i32_0 : i32, i32
  }
  func.func @transform_2(%arg0: i32) -> (i32, i32) {
    %c0_i32 = arith.constant 0 : i32
    %c0_i32_0 = arith.constant 0 : i32
    %c0_i32_1 = arith.constant 0 : i32
    return %c0_i32, %c0_i32_0 : i32, i32
  }
  func.func @transform_3(%arg0: i32) -> (i32, i32) {
    %c0_i32 = arith.constant 0 : i32
    %c0_i32_0 = arith.constant 0 : i32
    %c0_i32_1 = arith.constant 0 : i32
    return %c0_i32, %c0_i32_0 : i32, i32
  }
  func.func @transform_4(%arg0: i32) -> (i32, i32) {
    %c0_i32 = arith.constant 0 : i32
    %c0_i32_0 = arith.constant 0 : i32
    %c0_i32_1 = arith.constant 0 : i32
    return %c0_i32, %c0_i32_0 : i32, i32
  }
  func.func @transform_5(%arg0: i32) -> (i32, i32) {
    %c0_i32 = arith.constant 0 : i32
    %c0_i32_0 = arith.constant 0 : i32
    %c0_i32_1 = arith.constant 0 : i32
    return %c0_i32, %c0_i32_0 : i32, i32
  }
  func.func @transform_6(%arg0: i32) -> (i32, i32) {
    %c0_i32 = arith.constant 0 : i32
    %c0_i32_0 = arith.constant 0 : i32
    %c0_i32_1 = arith.constant 0 : i32
    return %c0_i32, %c0_i32_0 : i32, i32
  }
  func.func @transform_7(%arg0: i32) -> (i32, i32) {
    %c0_i32 = arith.constant 0 : i32
    %c0_i32_0 = arith.constant 0 : i32
    %c0_i32_1 = arith.constant 0 : i32
    return %c0_i32, %c0_i32_0 : i32, i32
  }
}

</mosaic_0001>

<llo_original>
// kernel: tpu_custom_call.1
$region0: #{tpu_custom_call.1}
  #allocation0 [shape = 'u32[]', space=smem, size = 0x4, offset = 0x4, fixed_abs, tag = 'smem constant byte address 0x4 - core index']
  #allocation1 [shape = 'u32[144,128]{1,0:T(1,128)}', space=vmem, size = 0x12000, scoped, tag = 'internal scratch']
  #allocation2 [shape = 'f32[32,256]{1,0:T(8,128)}', space=vmem, size = 0x8000, scoped, tag = 'scratch operand']
  %s0 = inlined_call_operand.hbm [shape: f32[32,784], index: 0, kind: input, shape index: {}]
  %s1 = inlined_call_operand.hbm [shape: bf16[784,256], index: 1, kind: input, shape index: {}]
  %s2 = inlined_call_operand.hbm [shape: bf16[256,128], index: 2, kind: input, shape index: {}]
  %s3 = inlined_call_operand.hbm [shape: bf16[128,128], index: 3, kind: input, shape index: {}]
  %s4 = inlined_call_operand.hbm [shape: bf16[128,128], index: 4, kind: input, shape index: {}]
  %s5 = inlined_call_operand.hbm [shape: bf16[128,128], index: 5, kind: input, shape index: {}]
  %s6 = inlined_call_operand.hbm [shape: f32[16,256], index: 6, kind: input, shape index: {}]
  %s7 = inlined_call_operand.hbm [shape: f32[32,128], index: 7, kind: output, shape index: {}]
  %s8 = sld [smem:[#allocation0]]
  $region93: #{tpu_custom_call.1} parent=0
    _
  %s10 = ssub.s32 1, %s8
  %s11 = scalar_select 0, %s10, %s8
  $region1: #{tpu_custom_call.1} parent=0
    #allocation3 [shape = 'u8[114688]{0}', space=vmem, size = 0x1c000, scoped, tag = 'input window, operand 0']
    #allocation4 [shape = 's32[2]{0}', space=sflag, size = 0x8, scoped, tag = 'scoped memory for tpu_custom_call.1']
    #allocation5 [shape = 's32[2]{0}', space=sflag, size = 0x8, scoped, tag = 'scoped memory for tpu_custom_call.1']
    #allocation6 [shape = 'u8[401408]{0}', space=vmem, size = 0x62000, scoped, tag = 'input window, operand 1, single buffered']
    #allocation7 [shape = 's32[1]{0}', space=sflag, size = 0x4, scoped, tag = 'scoped memory for tpu_custom_call.1']
    #allocation8 [shape = 'u8[65536]{0}', space=vmem, size = 0x10000, scoped, tag = 'input window, operand 2, single buffered']
    #allocation9 [shape = 'u8[32768]{0}', space=vmem, size = 0x8000, scoped, tag = 'input window, operand 3, single buffered']
    #allocation10 [shape = 's32[1]{0}', space=sflag, size = 0x4, scoped, tag = 'scoped memory for tpu_custom_call.1']
    #allocation11 [shape = 'u8[32768]{0}', space=vmem, size = 0x8000, scoped, tag = 'input window, operand 4, single buffered']
    #allocation12 [shape = 'u8[32768]{0}', space=vmem, size = 0x8000, scoped, tag = 'input window, operand 5, single buffered']
    #allocation13 [shape = 's32[1]{0}', space=sflag, size = 0x4, scoped, tag = 'scoped memory for tpu_custom_call.1']
    #allocation14 [shape = 'u8[16384]{0}', space=vmem, size = 0x4000, scoped, tag = 'input window, operand 6, single buffered']
    #allocation15 [shape = 'u8[16384]{0}', space=vmem, size = 0x4000, scoped, tag = 'output window, operand 0, single buffered']
    %12 = vsyncpa [#allocation4], 0
    %s13 = scalar_lea.sflag [#allocation4], 1
    %14 = vsyncpa %s13, 0
    %15 = vsyncpa [#allocation7], 0
    %16 = vsyncpa [#allocation10], 0
    %17 = vsyncpa [#allocation13], 0
    %18 = vsyncpa [#allocation5], 0
    loop: start=0, step=1, limit=4
    $region2: #{tpu_custom_call.1} parent=1 // loop_pre_header
      _
    $region3: #{tpu_custom_call.1} parent=1 // loop_header
      %s20 = sphi 0, %s24
      %p21 = scmp.ge.s32.totalorder %s20, 4
      %s30 = sphi 0, %s32
      %s33 = sphi 0, %s30
      %s34 = sphi 0, %s33
      %s50 = sphi 0, %s34
      %s54 = sphi 0, %s54
      %s56 = sphi 0, %s54
      %s57 = sphi 0, %s56
      %s71 = sphi 0, %s57
      %s75 = sphi 0, %s75
      %s77 = sphi 0, %s75
      %s78 = sphi 0, %s77
      %s92 = sphi 0, %s78
      %s96 = sphi 0, %s96
      %s98 = sphi 0, %s96
      %s99 = sphi 0, %s98
      %s113 = sphi 0, %s99
      %s117 = sphi 0, %s117
      %s119 = sphi 0, %s117
      %s120 = sphi 0, %s119
      %s134 = sphi 0, %s120
      %s138 = sphi 0, %s138
      %s140 = sphi 0, %s138
      %s141 = sphi 0, %s140
      %s155 = sphi 0, %s141
      %s159 = sphi 0, %s159
      %s161 = sphi 0, %s159
      %s162 = sphi 0, %s161
      %s176 = sphi 0, %s162
      %s180 = sphi 0, %s180
      %s182 = sphi 0, %s180
      %s183 = sphi 0, %s182
      %s197 = sphi 0, %s183
    $region4: #{tpu_custom_call.1} parent=1 // loop_header_branch
      %23 = sbr.rel (%p21) target = $region8
    $region5: #{tpu_custom_call.1} parent=1 // loop_body
      %s25 = ssub.s32 %s20, 1
      %s26 = ssub.s32 %s20, 2
      %s27 = sadd.s32 %s20, 1
      %s28 = ssub.s32 %s20, %s27
      %p29 = scmp.eq.s32.totalorder %s28, 0
      %s31 = sadd.s32 %s30, 1
      %s32 = scalar_select %p29, %s30, %s31
      %p35 = pneg %p29
      %p36 = scmp.eq.s32.totalorder %s20, 1
      %p37 = por %p35, %p36
      %p38 = scmp.ne.s32.totalorder %s30, %s33
      %p39 = scmp.eq.s32.totalorder %s20, 0
      %p40 = por %p38, %p39
      %p41 = scmp.ne.s32.totalorder %s30, %s33
      %p42 = scmp.eq.s32.totalorder %s25, 1
      %p43 = por %p41, %p42
      %p44 = scmp.ne.s32.totalorder %s33, %s34
      %p45 = scmp.eq.s32.totalorder %s25, 0
      %p46 = por %p44, %p45
      %p47 = scmp.ne.s32.totalorder %s33, %s34
      %p48 = scmp.eq.s32.totalorder %s26, 1
      %p49 = por %p47, %p48
      %p51 = scmp.ne.s32.totalorder %s34, %s50
      %p52 = scmp.eq.s32.totalorder %s26, 0
      %p53 = por %p51, %p52
      %s55 = sadd.s32 %s54, 1
      %p58 = scmp.eq.s32.totalorder %s20, 1
      %p59 = scmp.ne.s32.totalorder %s54, %s56
      %p60 = scmp.eq.s32.totalorder %s20, 0
      %p61 = por %p59, %p60
      %p62 = scmp.ne.s32.totalorder %s54, %s56
      %p63 = scmp.eq.s32.totalorder %s25, 1
      %p64 = por %p62, %p63
      %p65 = scmp.ne.s32.totalorder %s56, %s57
      %p66 = scmp.eq.s32.totalorder %s25, 0
      %p67 = por %p65, %p66
      %p68 = scmp.ne.s32.totalorder %s56, %s57
      %p69 = scmp.eq.s32.totalorder %s26, 1
      %p70 = por %p68, %p69
      %p72 = scmp.ne.s32.totalorder %s57, %s71
      %p73 = scmp.eq.s32.totalorder %s26, 0
      %p74 = por %p72, %p73
      %s76 = sadd.s32 %s75, 1
      %p79 = scmp.eq.s32.totalorder %s20, 1
      %p80 = scmp.ne.s32.totalorder %s75, %s77
      %p81 = scmp.eq.s32.totalorder %s20, 0
      %p82 = por %p80, %p81
      %p83 = scmp.ne.s32.totalorder %s75, %s77
      %p84 = scmp.eq.s32.totalorder %s25, 1
      %p85 = por %p83, %p84
      %p86 = scmp.ne.s32.totalorder %s77, %s78
      %p87 = scmp.eq.s32.totalorder %s25, 0
      %p88 = por %p86, %p87
      %p89 = scmp.ne.s32.totalorder %s77, %s78
      %p90 = scmp.eq.s32.totalorder %s26, 1
      %p91 = por %p89, %p90
      %p93 = scmp.ne.s32.totalorder %s78, %s92
      %p94 = scmp.eq.s32.totalorder %s26, 0
      %p95 = por %p93, %p94
      %s97 = sadd.s32 %s96, 1
      %p100 = scmp.eq.s32.totalorder %s20, 1
      %p101 = scmp.ne.s32.totalorder %s96, %s98
      %p102 = scmp.eq.s32.totalorder %s20, 0
      %p103 = por %p101, %p102
      %p104 = scmp.ne.s32.totalorder %s96, %s98
      %p105 = scmp.eq.s32.totalorder %s25, 1
      %p106 = por %p104, %p105
      %p107 = scmp.ne.s32.totalorder %s98, %s99
      %p108 = scmp.eq.s32.totalorder %s25, 0
      %p109 = por %p107, %p108
      %p110 = scmp.ne.s32.totalorder %s98, %s99
      %p111 = scmp.eq.s32.totalorder %s26, 1
      %p112 = por %p110, %p111
      %p114 = scmp.ne.s32.totalorder %s99, %s113
      %p115 = scmp.eq.s32.totalorder %s26, 0
      %p116 = por %p114, %p115
      %s118 = sadd.s32 %s117, 1
      %p121 = scmp.eq.s32.totalorder %s20, 1
      %p122 = scmp.ne.s32.totalorder %s117, %s119
      %p123 = scmp.eq.s32.totalorder %s20, 0
      %p124 = por %p122, %p123
      %p125 = scmp.ne.s32.totalorder %s117, %s119
      %p126 = scmp.eq.s32.totalorder %s25, 1
      %p127 = por %p125, %p126
      %p128 = scmp.ne.s32.totalorder %s119, %s120
      %p129 = scmp.eq.s32.totalorder %s25, 0
      %p130 = por %p128, %p129
      %p131 = scmp.ne.s32.totalorder %s119, %s120
      %p132 = scmp.eq.s32.totalorder %s26, 1
      %p133 = por %p131, %p132
      %p135 = scmp.ne.s32.totalorder %s120, %s134
      %p136 = scmp.eq.s32.totalorder %s26, 0
      %p137 = por %p135, %p136
      %s139 = sadd.s32 %s138, 1
      %p142 = scmp.eq.s32.totalorder %s20, 1
      %p143 = scmp.ne.s32.totalorder %s138, %s140
      %p144 = scmp.eq.s32.totalorder %s20, 0
      %p145 = por %p143, %p144
      %p146 = scmp.ne.s32.totalorder %s138, %s140
      %p147 = scmp.eq.s32.totalorder %s25, 1
      %p148 = por %p146, %p147
      %p149 = scmp.ne.s32.totalorder %s140, %s141
      %p150 = scmp.eq.s32.totalorder %s25, 0
      %p151 = por %p149, %p150
      %p152 = scmp.ne.s32.totalorder %s140, %s141
      %p153 = scmp.eq.s32.totalorder %s26, 1
      %p154 = por %p152, %p153
      %p156 = scmp.ne.s32.totalorder %s141, %s155
      %p157 = scmp.eq.s32.totalorder %s26, 0
      %p158 = por %p156, %p157
      %s160 = sadd.s32 %s159, 1
      %p163 = scmp.eq.s32.totalorder %s20, 1
      %p164 = scmp.ne.s32.totalorder %s159, %s161
      %p165 = scmp.eq.s32.totalorder %s20, 0
      %p166 = por %p164, %p165
      %p167 = scmp.ne.s32.totalorder %s159, %s161
      %p168 = scmp.eq.s32.totalorder %s25, 1
      %p169 = por %p167, %p168
      %p170 = scmp.ne.s32.totalorder %s161, %s162
      %p171 = scmp.eq.s32.totalorder %s25, 0
      %p172 = por %p170, %p171
      %p173 = scmp.ne.s32.totalorder %s161, %s162
      %p174 = scmp.eq.s32.totalorder %s26, 1
      %p175 = por %p173, %p174
      %p177 = scmp.ne.s32.totalorder %s162, %s176
      %p178 = scmp.eq.s32.totalorder %s26, 0
      %p179 = por %p177, %p178
      %s181 = sadd.s32 %s180, 1
      %p184 = scmp.eq.s32.totalorder %s20, 1
      %p185 = scmp.ne.s32.totalorder %s180, %s182
      %p186 = scmp.eq.s32.totalorder %s20, 0
      %p187 = por %p185, %p186
      %p188 = scmp.ne.s32.totalorder %s180, %s182
      %p189 = scmp.eq.s32.totalorder %s25, 1
      %p190 = por %p188, %p189
      %p191 = scmp.ne.s32.totalorder %s182, %s183
      %p192 = scmp.eq.s32.totalorder %s25, 0
      %p193 = por %p191, %p192
      %p194 = scmp.ne.s32.totalorder %s182, %s183
      %p195 = scmp.eq.s32.totalorder %s26, 1
      %p196 = por %p194, %p195
      %p198 = scmp.ne.s32.totalorder %s183, %s197
      %p199 = scmp.eq.s32.totalorder %s26, 0
      %p200 = por %p198, %p199
      %p201 = scmp.le.s32.totalorder 1, %s20
      %p202 = scmp.lt.s32.totalorder %s20, 3
      %p203 = pnand %p201, %p202
      %p204 = pneg %p203
      // Predicated region
      $region9: #{tpu_custom_call.1} parent=5 // pred_check
        _
      $region10: #{tpu_custom_call.1} parent=5 // pred_check_branch
        %206 = sbr.rel (%p203) target = $region12
      $region11: #{tpu_custom_call.1} parent=5 // pred_region
        %s207 = ssub.s32 %s20, 1
        // Predicated region
        $region13: #{tpu_custom_call.1} parent=11 // pred_check
          %p208 = pneg %p67
        $region14: #{tpu_custom_call.1} parent=11 // pred_check_branch
          %210 = sbr.rel (%p208) target = $region16
        $region15: #{tpu_custom_call.1} parent=11 // pred_region
          %s212 = ssub.s32 12544, 12544
          %213 = vsyncadd [#allocation7], %s212
          %s214 = sshll.u32 [#allocation6], 4
          %s215 = int_to_ptr.vmem [resolvable:$true] %s214
          %220 = dma.hbm_to_vmem [thread:$0]  %s1, 12544, %s215, [#allocation7], 128, 128, 8
        $region16: #{tpu_custom_call.1} parent=11 // pred_fallthru
          _
        // Predicated region
        $region17: #{tpu_custom_call.1} parent=11 // pred_check
          %p221 = pneg %p88
        $region18: #{tpu_custom_call.1} parent=11 // pred_check_branch
          %223 = sbr.rel (%p221) target = $region20
        $region19: #{tpu_custom_call.1} parent=11 // pred_region
          %s225 = ssub.s32 2048, 2048
          %226 = vsyncadd [#allocation7], %s225
          %s227 = sshll.u32 [#allocation8], 4
          %s228 = int_to_ptr.vmem [resolvable:$true] %s227
          %233 = dma.hbm_to_vmem [thread:$0]  %s2, 2048, %s228, [#allocation7], 64, 64, 4
        $region20: #{tpu_custom_call.1} parent=11 // pred_fallthru
          _
        // Predicated region
        $region21: #{tpu_custom_call.1} parent=11 // pred_check
          %p234 = pneg %p109
        $region22: #{tpu_custom_call.1} parent=11 // pred_check_branch
          %236 = sbr.rel (%p234) target = $region24
        $region23: #{tpu_custom_call.1} parent=11 // pred_region
          %s238 = ssub.s32 1024, 1024
          %239 = vsyncadd [#allocation10], %s238
          %s240 = sshll.u32 [#allocation9], 4
          %s241 = int_to_ptr.vmem [resolvable:$true] %s240
          %246 = dma.hbm_to_vmem [thread:$0]  %s3, 1024, %s241, [#allocation10], 64, 64, 4
        $region24: #{tpu_custom_call.1} parent=11 // pred_fallthru
          _
        // Predicated region
        $region25: #{tpu_custom_call.1} parent=11 // pred_check
          %p247 = pneg %p130
        $region26: #{tpu_custom_call.1} parent=11 // pred_check_branch
          %249 = sbr.rel (%p247) target = $region28
        $region27: #{tpu_custom_call.1} parent=11 // pred_region
          %s251 = ssub.s32 1024, 1024
          %252 = vsyncadd [#allocation10], %s251
          %s253 = sshll.u32 [#allocation11], 4
          %s254 = int_to_ptr.vmem [resolvable:$true] %s253
          %259 = dma.hbm_to_vmem [thread:$0]  %s4, 1024, %s254, [#allocation10], 64, 64, 4
        $region28: #{tpu_custom_call.1} parent=11 // pred_fallthru
          _
        // Predicated region
        $region29: #{tpu_custom_call.1} parent=11 // pred_check
          %p260 = pneg %p151
        $region30: #{tpu_custom_call.1} parent=11 // pred_check_branch
          %262 = sbr.rel (%p260) target = $region32
        $region31: #{tpu_custom_call.1} parent=11 // pred_region
          %s264 = ssub.s32 1024, 1024
          %265 = vsyncadd [#allocation13], %s264
          %s266 = sshll.u32 [#allocation12], 4
          %s267 = int_to_ptr.vmem [resolvable:$true] %s266
          %272 = dma.hbm_to_vmem [thread:$0]  %s5, 1024, %s267, [#allocation13], 64, 64, 4
        $region32: #{tpu_custom_call.1} parent=11 // pred_fallthru
          _
        // Predicated region
        $region33: #{tpu_custom_call.1} parent=11 // pred_check
          %p273 = pneg %p172
        $region34: #{tpu_custom_call.1} parent=11 // pred_check_branch
          %275 = sbr.rel (%p273) target = $region36
        $region35: #{tpu_custom_call.1} parent=11 // pred_region
          %s277 = ssub.s32 512, 512
          %278 = vsyncadd [#allocation13], %s277
          %s279 = sshll.u32 [#allocation14], 4
          %s280 = int_to_ptr.vmem [resolvable:$true] %s279
          %285 = dma.hbm_to_vmem [thread:$0]  %s6, 512, %s280, [#allocation13], 256, 256, 16
        $region36: #{tpu_custom_call.1} parent=11 // pred_fallthru
          _
      $region12: #{tpu_custom_call.1} parent=5 // pred_fallthru
        _
      %p286 = scmp.lt.s32.totalorder %s20, 2
      // Predicated region
      $region37: #{tpu_custom_call.1} parent=5 // pred_check
        %p287 = pneg %p286
      $region38: #{tpu_custom_call.1} parent=5 // pred_check_branch
        %289 = sbr.rel (%p287) target = $region40
      $region39: #{tpu_custom_call.1} parent=5 // pred_region
        // Predicated region
        $region41: #{tpu_custom_call.1} parent=39 // pred_check
          %p290 = pneg %p40
        $region42: #{tpu_custom_call.1} parent=39 // pred_check_branch
          %292 = sbr.rel (%p290) target = $region44
        $region43: #{tpu_custom_call.1} parent=39 // pred_region
          %s293 = sand.u32 %s30, 1
          %s294 = scalar_lea.sflag [#allocation4], %s293
          %s295 = sand.u32 %s30, 1
          %s296 = smul.addr %s295, 112
          %s297 = scalar_lea.vmem [#allocation3], %s296
          %s298 = smul.u32 2, %s20
          %s300 = ssub.s32 1792, 1792
          %301 = vsyncadd %s294, %s300
          %s302 = smul.addr %s298, 7
          %s303 = smul.addr %s302, 128
          %s304 = scalar_lea.hbm %s0, %s303
          %s305 = sshll.u32 %s297, 4
          %s306 = int_to_ptr.vmem [resolvable:$true] %s305
          %311 = dma.hbm_to_vmem [thread:$0]  %s304, 1792, %s306, %s294, 896, 896, 56
        $region44: #{tpu_custom_call.1} parent=39 // pred_fallthru
          _
      $region40: #{tpu_custom_call.1} parent=5 // pred_fallthru
        _
      %p312 = scmp.le.s32.totalorder 1, %s20
      %p313 = scmp.lt.s32.totalorder %s20, 3
      %p314 = pnand %p312, %p313
      %p315 = pneg %p314
      // Predicated region
      $region45: #{tpu_custom_call.1} parent=5 // pred_check
        _
      $region46: #{tpu_custom_call.1} parent=5 // pred_check_branch
        %317 = sbr.rel (%p314) target = $region48
      $region47: #{tpu_custom_call.1} parent=5 // pred_region
        %s318 = ssub.s32 %s20, 1
        %s319 = sand.u32 %s33, 1
        %s320 = scalar_lea.sflag [#allocation4], %s319
        %s321 = sand.u32 %s33, 1
        %s322 = smul.addr %s321, 112
        %s323 = scalar_lea.vmem [#allocation3], %s322
        // Predicated region
        $region49: #{tpu_custom_call.1} parent=47 // pred_check
          %p324 = pneg %p46
        $region50: #{tpu_custom_call.1} parent=47 // pred_check_branch
          %326 = sbr.rel (%p324) target = $region52
        $region51: #{tpu_custom_call.1} parent=47 // pred_region
          %327 = dma.done %s320, 1792
        $region52: #{tpu_custom_call.1} parent=47 // pred_fallthru
          _
        // Predicated region
        $region53: #{tpu_custom_call.1} parent=47 // pred_check
          %p328 = pneg %p67
        $region54: #{tpu_custom_call.1} parent=47 // pred_check_branch
          %330 = sbr.rel (%p328) target = $region56
        $region55: #{tpu_custom_call.1} parent=47 // pred_region
          %331 = dma.done [#allocation7], 12544
        $region56: #{tpu_custom_call.1} parent=47 // pred_fallthru
          _
        // Predicated region
        $region57: #{tpu_custom_call.1} parent=47 // pred_check
          %p332 = pneg %p88
        $region58: #{tpu_custom_call.1} parent=47 // pred_check_branch
          %334 = sbr.rel (%p332) target = $region60
        $region59: #{tpu_custom_call.1} parent=47 // pred_region
          %335 = dma.done [#allocation7], 2048
        $region60: #{tpu_custom_call.1} parent=47 // pred_fallthru
          _
        // Predicated region
        $region61: #{tpu_custom_call.1} parent=47 // pred_check
          %p336 = pneg %p109
        $region62: #{tpu_custom_call.1} parent=47 // pred_check_branch
          %338 = sbr.rel (%p336) target = $region64
        $region63: #{tpu_custom_call.1} parent=47 // pred_region
          %339 = dma.done [#allocation10], 1024
        $region64: #{tpu_custom_call.1} parent=47 // pred_fallthru
          _
        // Predicated region
        $region65: #{tpu_custom_call.1} parent=47 // pred_check
          %p340 = pneg %p130
        $region66: #{tpu_custom_call.1} parent=47 // pred_check_branch
          %342 = sbr.rel (%p340) target = $region68
        $region67: #{tpu_custom_call.1} parent=47 // pred_region
          %343 = dma.done [#allocation10], 1024
        $region68: #{tpu_custom_call.1} parent=47 // pred_fallthru
          _
        // Predicated region
        $region69: #{tpu_custom_call.1} parent=47 // pred_check
          %p344 = pneg %p151
        $region70: #{tpu_custom_call.1} parent=47 // pred_check_branch
          %346 = sbr.rel (%p344) target = $region72
        $region71: #{tpu_custom_call.1} parent=47 // pred_region
          %347 = dma.done [#allocation13], 1024
        $region72: #{tpu_custom_call.1} parent=47 // pred_fallthru
          _
        // Predicated region
        $region73: #{tpu_custom_call.1} parent=47 // pred_check
          %p348 = pneg %p172
        $region74: #{tpu_custom_call.1} parent=47 // pred_check_branch
          %350 = sbr.rel (%p348) target = $region76
        $region75: #{tpu_custom_call.1} parent=47 // pred_region
          %351 = dma.done [#allocation13], 512
        $region76: #{tpu_custom_call.1} parent=47 // pred_fallthru
          _
        %s352 = sand.u32 %s33, 1
        %s353 = scalar_lea.sflag [#allocation4], %s352
        %s354 = sand.u32 %s33, 1
        %s355 = smul.addr %s354, 112
        %s356 = scalar_lea.vmem [#allocation3], %s355
        %p357 = pneg %p46
        %p358 = pneg %p43
        %p359 = pneg %p67
        %p360 = pneg %p64
        %p361 = pneg %p88
        %p362 = pneg %p85
        %p363 = pneg %p109
        %p364 = pneg %p106
        %p365 = pneg %p130
        %p366 = pneg %p127
        %p367 = pneg %p151
        %p368 = pneg %p148
        %p369 = pneg %p172
        %p370 = pneg %p169
        %p371 = pneg %p193
        %p372 = pneg %p190
        %s373 = smul.u32 2, %s25
        %v375 = vld [vmem:[%s323] sm:$0xff]
        %v376 = vld [vmem:[%s323 + $0x8] sm:$0xff]
        %v377 = vld [vmem:[%s323 + $0x10] sm:$0xff]
        %v378 = vld [vmem:[%s323 + $0x18] sm:$0xff]
        %v379 = vld [vmem:[%s323 + $0x20] sm:$0xff]
        %v380 = vld [vmem:[%s323 + $0x28] sm:$0xff]
        %v381 = vld [vmem:[%s323 + $0x30] sm:$0xff]
        %v382 = vld [vmem:[%s323 + $0x38] sm:$0xff]
        %v383 = vld [vmem:[%s323 + $0x40] sm:$0xff]
        %v384 = vld [vmem:[%s323 + $0x48] sm:$0xff]
        %v385 = vld [vmem:[%s323 + $0x50] sm:$0xff]
        %v386 = vld [vmem:[%s323 + $0x58] sm:$0xff]
        %v387 = vld [vmem:[%s323 + $0x60] sm:$0xff]
        %v388 = vld [vmem:[%s323 + $0x68] sm:$0xff]
        %v389 = vpack.c.bf16 %v382, %v375
        %v390 = vpack.c.bf16 %v383, %v376
        %v391 = vpack.c.bf16 %v384, %v377
        %v392 = vpack.c.bf16 %v385, %v378
        %v393 = vpack.c.bf16 %v386, %v379
        %v394 = vpack.c.bf16 %v387, %v380
        %v395 = vpack.c.bf16 %v388, %v381
        %v396 = vld [vmem:[#allocation6] sm:$0xff]
        %v397 = vld [vmem:[#allocation6 + $0x8] sm:$0xff]
        %v398 = vld [vmem:[#allocation6 + $0x10] sm:$0xff]
        %v399 = vld [vmem:[#allocation6 + $0x18] sm:$0xff]
        %v400 = vld [vmem:[#allocation6 + $0x20] sm:$0xff]
        %v401 = vld [vmem:[#allocation6 + $0x28] sm:$0xff]
        %v402 = vld [vmem:[#allocation6 + $0x30] sm:$0xff]
        %v403 = vld [vmem:[#allocation6 + $0x38] sm:$0xff]
        %v404 = vld [vmem:[#allocation6 + $0x40] sm:$0xff]
        %v405 = vld [vmem:[#allocation6 + $0x48] sm:$0xff]
        %v406 = vld [vmem:[#allocation6 + $0x50] sm:$0xff]
        %v407 = vld [vmem:[#allocation6 + $0x58] sm:$0xff]
        %v408 = vld [vmem:[#allocation6 + $0x60] sm:$0xff]
        %v409 = vld [vmem:[#allocation6 + $0x68] sm:$0xff]
        %v410 = vld [vmem:[#allocation6 + $0x70] sm:$0xff]
        %v411 = vld [vmem:[#allocation6 + $0x78] sm:$0xff]
        %v412 = vld [vmem:[#allocation6 + $0x80] sm:$0xff]
        %v413 = vld [vmem:[#allocation6 + $0x88] sm:$0xff]
        %v414 = vld [vmem:[#allocation6 + $0x90] sm:$0xff]
        %v415 = vld [vmem:[#allocation6 + $0x98] sm:$0xff]
        %v416 = vld [vmem:[#allocation6 + $0xa0] sm:$0xff]
        %v417 = vld [vmem:[#allocation6 + $0xa8] sm:$0xff]
        %v418 = vld [vmem:[#allocation6 + $0xb0] sm:$0xff]
        %v419 = vld [vmem:[#allocation6 + $0xb8] sm:$0xff]
        %v420 = vld [vmem:[#allocation6 + $0xc0] sm:$0xff]
        %v421 = vld [vmem:[#allocation6 + $0xc8] sm:$0xff]
        %v422 = vld [vmem:[#allocation6 + $0xd0] sm:$0xff]
        %v423 = vld [vmem:[#allocation6 + $0xd8] sm:$0xff]
        %v424 = vld [vmem:[#allocation6 + $0xe0] sm:$0xff]
        %v425 = vld [vmem:[#allocation6 + $0xe8] sm:$0xff]
        %v426 = vld [vmem:[#allocation6 + $0xf0] sm:$0xff]
        %v427 = vld [vmem:[#allocation6 + $0xf8] sm:$0xff]
        %v428 = vld [vmem:[#allocation6 + $0x100] sm:$0xff]
        %v429 = vld [vmem:[#allocation6 + $0x108] sm:$0xff]
        %v430 = vld [vmem:[#allocation6 + $0x110] sm:$0xff]
        %v431 = vld [vmem:[#allocation6 + $0x118] sm:$0xff]
        %v432 = vld [vmem:[#allocation6 + $0x120] sm:$0xff]
        %v433 = vld [vmem:[#allocation6 + $0x128] sm:$0xff]
        %v434 = vld [vmem:[#allocation6 + $0x130] sm:$0xff]
        %v435 = vld [vmem:[#allocation6 + $0x138] sm:$0xff]
        %v436 = vld [vmem:[#allocation6 + $0x140] sm:$0xff]
        %v437 = vld [vmem:[#allocation6 + $0x148] sm:$0xff]
        %v438 = vld [vmem:[#allocation6 + $0x150] sm:$0xff]
        %v439 = vld [vmem:[#allocation6 + $0x158] sm:$0xff]
        %v440 = vld [vmem:[#allocation6 + $0x160] sm:$0xff]
        %v441 = vld [vmem:[#allocation6 + $0x168] sm:$0xff]
        %v442 = vld [vmem:[#allocation6 + $0x170] sm:$0xff]
        %v443 = vld [vmem:[#allocation6 + $0x178] sm:$0xff]
        %v444 = vld [vmem:[#allocation6 + $0x180] sm:$0xff]
        %v445 = vld [vmem:[#allocation6 + $0x188] sm:$0xff]
        %v446 = vld [vmem:[#allocation6 + $0x190] sm:$0xff]
        %v447 = vld [vmem:[#allocation6 + $0x198] sm:$0xff]
        %v448 = vld [vmem:[#allocation6 + $0x1a0] sm:$0xff]
        %v449 = vld [vmem:[#allocation6 + $0x1a8] sm:$0xff]
        %v450 = vld [vmem:[#allocation6 + $0x1b0] sm:$0xff]
        %v451 = vld [vmem:[#allocation6 + $0x1b8] sm:$0xff]
        %v452 = vld [vmem:[#allocation6 + $0x1c0] sm:$0xff]
        %v453 = vld [vmem:[#allocation6 + $0x1c8] sm:$0xff]
        %v454 = vld [vmem:[#allocation6 + $0x1d0] sm:$0xff]
        %v455 = vld [vmem:[#allocation6 + $0x1d8] sm:$0xff]
        %v456 = vld [vmem:[#allocation6 + $0x1e0] sm:$0xff]
        %v457 = vld [vmem:[#allocation6 + $0x1e8] sm:$0xff]
        %v458 = vld [vmem:[#allocation6 + $0x1f0] sm:$0xff]
        %v459 = vld [vmem:[#allocation6 + $0x1f8] sm:$0xff]
        %v460 = vld [vmem:[#allocation6 + $0x200] sm:$0xff]
        %v461 = vld [vmem:[#allocation6 + $0x208] sm:$0xff]
        %v462 = vld [vmem:[#allocation6 + $0x210] sm:$0xff]
        %v463 = vld [vmem:[#allocation6 + $0x218] sm:$0xff]
        %v464 = vld [vmem:[#allocation6 + $0x220] sm:$0xff]
        %v465 = vld [vmem:[#allocation6 + $0x228] sm:$0xff]
        %v466 = vld [vmem:[#allocation6 + $0x230] sm:$0xff]
        %v467 = vld [vmem:[#allocation6 + $0x238] sm:$0xff]
        %v468 = vld [vmem:[#allocation6 + $0x240] sm:$0xff]
        %v469 = vld [vmem:[#allocation6 + $0x248] sm:$0xff]
        %v470 = vld [vmem:[#allocation6 + $0x250] sm:$0xff]
        %v471 = vld [vmem:[#allocation6 + $0x258] sm:$0xff]
        %v472 = vld [vmem:[#allocation6 + $0x260] sm:$0xff]
        %v473 = vld [vmem:[#allocation6 + $0x268] sm:$0xff]
        %v474 = vld [vmem:[#allocation6 + $0x270] sm:$0xff]
        %v475 = vld [vmem:[#allocation6 + $0x278] sm:$0xff]
        %v476 = vld [vmem:[#allocation6 + $0x280] sm:$0xff]
        %v477 = vld [vmem:[#allocation6 + $0x288] sm:$0xff]
        %v478 = vld [vmem:[#allocation6 + $0x290] sm:$0xff]
        %v479 = vld [vmem:[#allocation6 + $0x298] sm:$0xff]
        %v480 = vld [vmem:[#allocation6 + $0x2a0] sm:$0xff]
        %v481 = vld [vmem:[#allocation6 + $0x2a8] sm:$0xff]
        %v482 = vld [vmem:[#allocation6 + $0x2b0] sm:$0xff]
        %v483 = vld [vmem:[#allocation6 + $0x2b8] sm:$0xff]
        %v484 = vld [vmem:[#allocation6 + $0x2c0] sm:$0xff]
        %v485 = vld [vmem:[#allocation6 + $0x2c8] sm:$0xff]
        %v486 = vld [vmem:[#allocation6 + $0x2d0] sm:$0xff]
        %v487 = vld [vmem:[#allocation6 + $0x2d8] sm:$0xff]
        %v488 = vld [vmem:[#allocation6 + $0x2e0] sm:$0xff]
        %v489 = vld [vmem:[#allocation6 + $0x2e8] sm:$0xff]
        %v490 = vld [vmem:[#allocation6 + $0x2f0] sm:$0xff]
        %v491 = vld [vmem:[#allocation6 + $0x2f8] sm:$0xff]
        %v492 = vld [vmem:[#allocation6 + $0x300] sm:$0xff]
        %v493 = vld [vmem:[#allocation6 + $0x308] sm:$0xff]
        %v592 = vunpack.c.l.b16 %v396
        %v593 = vunpack.c.h.b16 %v396
        %v594 = vunpack.c.l.b16 %v397
        %v595 = vunpack.c.h.b16 %v397
        %v596 = vunpack.c.l.b16 %v398
        %v597 = vunpack.c.h.b16 %v398
        %v598 = vunpack.c.l.b16 %v399
        %v599 = vunpack.c.h.b16 %v399
        %v600 = vunpack.c.l.b16 %v400
        %v601 = vunpack.c.h.b16 %v400
        %v602 = vunpack.c.l.b16 %v401
        %v603 = vunpack.c.h.b16 %v401
        %v604 = vunpack.c.l.b16 %v402
        %v605 = vunpack.c.h.b16 %v402
        %v606 = vunpack.c.l.b16 %v403
        %v607 = vunpack.c.h.b16 %v403
        %v608 = vunpack.c.l.b16 %v404
        %v609 = vunpack.c.h.b16 %v404
        %v610 = vunpack.c.l.b16 %v405
        %v611 = vunpack.c.h.b16 %v405
        %v612 = vunpack.c.l.b16 %v406
        %v613 = vunpack.c.h.b16 %v406
        %v614 = vunpack.c.l.b16 %v407
        %v615 = vunpack.c.h.b16 %v407
        %v616 = vunpack.c.l.b16 %v408
        %v617 = vunpack.c.h.b16 %v408
        %v618 = vunpack.c.l.b16 %v409
        %v619 = vunpack.c.h.b16 %v409
        %v620 = vunpack.c.l.b16 %v410
        %v621 = vunpack.c.h.b16 %v410
        %v622 = vunpack.c.l.b16 %v411
        %v623 = vunpack.c.h.b16 %v411
        %v624 = vunpack.c.l.b16 %v412
        %v625 = vunpack.c.h.b16 %v412
        %v626 = vunpack.c.l.b16 %v413
        %v627 = vunpack.c.h.b16 %v413
        %v628 = vunpack.c.l.b16 %v414
        %v629 = vunpack.c.h.b16 %v414
        %v630 = vunpack.c.l.b16 %v415
        %v631 = vunpack.c.h.b16 %v415
        %v632 = vunpack.c.l.b16 %v416
        %v633 = vunpack.c.h.b16 %v416
        %v634 = vunpack.c.l.b16 %v417
        %v635 = vunpack.c.h.b16 %v417
        %v636 = vunpack.c.l.b16 %v418
        %v637 = vunpack.c.h.b16 %v418
        %v638 = vunpack.c.l.b16 %v419
        %v639 = vunpack.c.h.b16 %v419
        %v640 = vunpack.c.l.b16 %v420
        %v641 = vunpack.c.h.b16 %v420
        %v642 = vunpack.c.l.b16 %v421
        %v643 = vunpack.c.h.b16 %v421
        %v644 = vunpack.c.l.b16 %v422
        %v645 = vunpack.c.h.b16 %v422
        %v646 = vunpack.c.l.b16 %v423
        %v647 = vunpack.c.h.b16 %v423
        %v648 = vunpack.c.l.b16 %v424
        %v649 = vunpack.c.h.b16 %v424
        %v650 = vunpack.c.l.b16 %v425
        %v651 = vunpack.c.h.b16 %v425
        %v652 = vunpack.c.l.b16 %v426
        %v653 = vunpack.c.h.b16 %v426
        %v654 = vunpack.c.l.b16 %v427
        %v655 = vunpack.c.h.b16 %v427
        %v656 = vunpack.c.l.b16 %v428
        %v657 = vunpack.c.h.b16 %v428
        %v658 = vunpack.c.l.b16 %v429
        %v659 = vunpack.c.h.b16 %v429
        %v660 = vunpack.c.l.b16 %v430
        %v661 = vunpack.c.h.b16 %v430
        %v662 = vunpack.c.l.b16 %v431
        %v663 = vunpack.c.h.b16 %v431
        %v664 = vunpack.c.l.b16 %v432
        %v665 = vunpack.c.h.b16 %v432
        %v666 = vunpack.c.l.b16 %v433
        %v667 = vunpack.c.h.b16 %v433
        %v668 = vunpack.c.l.b16 %v434
        %v669 = vunpack.c.h.b16 %v434
        %v670 = vunpack.c.l.b16 %v435
        %v671 = vunpack.c.h.b16 %v435
        %v672 = vunpack.c.l.b16 %v436
        %v673 = vunpack.c.h.b16 %v436
        %v674 = vunpack.c.l.b16 %v437
        %v675 = vunpack.c.h.b16 %v437
        %v676 = vunpack.c.l.b16 %v438
        %v677 = vunpack.c.h.b16 %v438
        %v678 = vunpack.c.l.b16 %v439
        %v679 = vunpack.c.h.b16 %v439
        %v680 = vunpack.c.l.b16 %v440
        %v681 = vunpack.c.h.b16 %v440
        %v682 = vunpack.c.l.b16 %v441
        %v683 = vunpack.c.h.b16 %v441
        %v684 = vunpack.c.l.b16 %v442
        %v685 = vunpack.c.h.b16 %v442
        %v686 = vunpack.c.l.b16 %v443
        %v687 = vunpack.c.h.b16 %v443
        %v688 = vunpack.c.l.b16 %v444
        %v689 = vunpack.c.h.b16 %v444
        %v690 = vunpack.c.l.b16 %v445
        %v691 = vunpack.c.h.b16 %v445
        %v692 = vunpack.c.l.b16 %v446
        %v693 = vunpack.c.h.b16 %v446
        %v694 = vunpack.c.l.b16 %v447
        %v695 = vunpack.c.h.b16 %v447
        %v696 = vunpack.c.l.b16 %v448
        %v697 = vunpack.c.h.b16 %v448
        %v698 = vunpack.c.l.b16 %v449
        %v699 = vunpack.c.h.b16 %v449
        %v700 = vunpack.c.l.b16 %v450
        %v701 = vunpack.c.h.b16 %v450
        %v702 = vunpack.c.l.b16 %v451
        %v703 = vunpack.c.h.b16 %v451
        %v704 = vunpack.c.l.b16 %v452
        %v705 = vunpack.c.h.b16 %v452
        %v706 = vunpack.c.l.b16 %v453
        %v707 = vunpack.c.h.b16 %v453
        %v708 = vunpack.c.l.b16 %v454
        %v709 = vunpack.c.h.b16 %v454
        %v710 = vunpack.c.l.b16 %v455
        %v711 = vunpack.c.h.b16 %v455
        %v712 = vunpack.c.l.b16 %v456
        %v713 = vunpack.c.h.b16 %v456
        %v714 = vunpack.c.l.b16 %v457
        %v715 = vunpack.c.h.b16 %v457
        %v716 = vunpack.c.l.b16 %v458
        %v717 = vunpack.c.h.b16 %v458
        %v718 = vunpack.c.l.b16 %v459
        %v719 = vunpack.c.h.b16 %v459
        %v720 = vunpack.c.l.b16 %v460
        %v721 = vunpack.c.h.b16 %v460
        %v722 = vunpack.c.l.b16 %v461
        %v723 = vunpack.c.h.b16 %v461
        %v724 = vunpack.c.l.b16 %v462
        %v725 = vunpack.c.h.b16 %v462
        %v726 = vunpack.c.l.b16 %v463
        %v727 = vunpack.c.h.b16 %v463
        %v728 = vunpack.c.l.b16 %v464
        %v729 = vunpack.c.h.b16 %v464
        %v730 = vunpack.c.l.b16 %v465
        %v731 = vunpack.c.h.b16 %v465
        %v732 = vunpack.c.l.b16 %v466
        %v733 = vunpack.c.h.b16 %v466
        %v734 = vunpack.c.l.b16 %v467
        %v735 = vunpack.c.h.b16 %v467
        %v736 = vunpack.c.l.b16 %v468
        %v737 = vunpack.c.h.b16 %v468
        %v738 = vunpack.c.l.b16 %v469
        %v739 = vunpack.c.h.b16 %v469
        %v740 = vunpack.c.l.b16 %v470
        %v741 = vunpack.c.h.b16 %v470
        %v742 = vunpack.c.l.b16 %v471
        %v743 = vunpack.c.h.b16 %v471
        %v744 = vunpack.c.l.b16 %v472
        %v745 = vunpack.c.h.b16 %v472
        %v746 = vunpack.c.l.b16 %v473
        %v747 = vunpack.c.h.b16 %v473
        %v748 = vunpack.c.l.b16 %v474
        %v749 = vunpack.c.h.b16 %v474
        %v750 = vunpack.c.l.b16 %v475
        %v751 = vunpack.c.h.b16 %v475
        %v752 = vunpack.c.l.b16 %v476
        %v753 = vunpack.c.h.b16 %v476
        %v754 = vunpack.c.l.b16 %v477
        %v755 = vunpack.c.h.b16 %v477
        %v756 = vunpack.c.l.b16 %v478
        %v757 = vunpack.c.h.b16 %v478
        %v758 = vunpack.c.l.b16 %v479
        %v759 = vunpack.c.h.b16 %v479
        %v760 = vunpack.c.l.b16 %v480
        %v761 = vunpack.c.h.b16 %v480
        %v762 = vunpack.c.l.b16 %v481
        %v763 = vunpack.c.h.b16 %v481
        %v764 = vunpack.c.l.b16 %v482
        %v765 = vunpack.c.h.b16 %v482
        %v766 = vunpack.c.l.b16 %v483
        %v767 = vunpack.c.h.b16 %v483
        %v768 = vunpack.c.l.b16 %v484
        %v769 = vunpack.c.h.b16 %v484
        %v770 = vunpack.c.l.b16 %v485
        %v771 = vunpack.c.h.b16 %v485
        %v772 = vunpack.c.l.b16 %v486
        %v773 = vunpack.c.h.b16 %v486
        %v774 = vunpack.c.l.b16 %v487
        %v775 = vunpack.c.h.b16 %v487
        %v776 = vunpack.c.l.b16 %v488
        %v777 = vunpack.c.h.b16 %v488
        %v778 = vunpack.c.l.b16 %v489
        %v779 = vunpack.c.h.b16 %v489
        %v780 = vunpack.c.l.b16 %v490
        %v781 = vunpack.c.h.b16 %v490
        %v782 = vunpack.c.l.b16 %v491
        %v783 = vunpack.c.h.b16 %v491
        %v784 = vunpack.c.l.b16 %v492
        %v785 = vunpack.c.h.b16 %v492
        %v786 = vunpack.c.l.b16 %v493
        %v787 = vunpack.c.h.b16 %v493
        %v788 = vpack.c.b16 %v594, %v592
        %v789 = vpack.c.b16 %v595, %v593
        %v790 = vpack.c.b16 %v598, %v596
        %v791 = vpack.c.b16 %v599, %v597
        %v792 = vpack.c.b16 %v602, %v600
        %v793 = vpack.c.b16 %v603, %v601
        %v794 = vpack.c.b16 %v606, %v604
        %v795 = vpack.c.b16 %v607, %v605
        %v796 = vpack.c.b16 %v610, %v608
        %v797 = vpack.c.b16 %v611, %v609
        %v798 = vpack.c.b16 %v614, %v612
        %v799 = vpack.c.b16 %v615, %v613
        %v800 = vpack.c.b16 %v618, %v616
        %v801 = vpack.c.b16 %v619, %v617
        %v802 = vpack.c.b16 %v622, %v620
        %v803 = vpack.c.b16 %v623, %v621
        %v804 = vpack.c.b16 %v626, %v624
        %v805 = vpack.c.b16 %v627, %v625
        %v806 = vpack.c.b16 %v630, %v628
        %v807 = vpack.c.b16 %v631, %v629
        %v808 = vpack.c.b16 %v634, %v632
        %v809 = vpack.c.b16 %v635, %v633
        %v810 = vpack.c.b16 %v638, %v636
        %v811 = vpack.c.b16 %v639, %v637
        %v812 = vpack.c.b16 %v642, %v640
        %v813 = vpack.c.b16 %v643, %v641
        %v814 = vpack.c.b16 %v646, %v644
        %v815 = vpack.c.b16 %v647, %v645
        %v816 = vpack.c.b16 %v650, %v648
        %v817 = vpack.c.b16 %v651, %v649
        %v818 = vpack.c.b16 %v654, %v652
        %v819 = vpack.c.b16 %v655, %v653
        %v820 = vpack.c.b16 %v658, %v656
        %v821 = vpack.c.b16 %v659, %v657
        %v822 = vpack.c.b16 %v662, %v660
        %v823 = vpack.c.b16 %v663, %v661
        %v824 = vpack.c.b16 %v666, %v664
        %v825 = vpack.c.b16 %v667, %v665
        %v826 = vpack.c.b16 %v670, %v668
        %v827 = vpack.c.b16 %v671, %v669
        %v828 = vpack.c.b16 %v674, %v672
        %v829 = vpack.c.b16 %v675, %v673
        %v830 = vpack.c.b16 %v678, %v676
        %v831 = vpack.c.b16 %v679, %v677
        %v832 = vpack.c.b16 %v682, %v680
        %v833 = vpack.c.b16 %v683, %v681
        %v834 = vpack.c.b16 %v686, %v684
        %v835 = vpack.c.b16 %v687, %v685
        %v836 = vpack.c.b16 %v690, %v688
        %v837 = vpack.c.b16 %v691, %v689
        %v838 = vpack.c.b16 %v694, %v692
        %v839 = vpack.c.b16 %v695, %v693
        %v840 = vpack.c.b16 %v698, %v696
        %v841 = vpack.c.b16 %v699, %v697
        %v842 = vpack.c.b16 %v702, %v700
        %v843 = vpack.c.b16 %v703, %v701
        %v844 = vpack.c.b16 %v706, %v704
        %v845 = vpack.c.b16 %v707, %v705
        %v846 = vpack.c.b16 %v710, %v708
        %v847 = vpack.c.b16 %v711, %v709
        %v848 = vpack.c.b16 %v714, %v712
        %v849 = vpack.c.b16 %v715, %v713
        %v850 = vpack.c.b16 %v718, %v716
        %v851 = vpack.c.b16 %v719, %v717
        %v852 = vpack.c.b16 %v722, %v720
        %v853 = vpack.c.b16 %v723, %v721
        %v854 = vpack.c.b16 %v726, %v724
        %v855 = vpack.c.b16 %v727, %v725
        %v856 = vpack.c.b16 %v730, %v728
        %v857 = vpack.c.b16 %v731, %v729
        %v858 = vpack.c.b16 %v734, %v732
        %v859 = vpack.c.b16 %v735, %v733
        %v860 = vpack.c.b16 %v738, %v736
        %v861 = vpack.c.b16 %v739, %v737
        %v862 = vpack.c.b16 %v742, %v740
        %v863 = vpack.c.b16 %v743, %v741
        %v864 = vpack.c.b16 %v746, %v744
        %v865 = vpack.c.b16 %v747, %v745
        %v866 = vpack.c.b16 %v750, %v748
        %v867 = vpack.c.b16 %v751, %v749
        %v868 = vpack.c.b16 %v754, %v752
        %v869 = vpack.c.b16 %v755, %v753
        %v870 = vpack.c.b16 %v758, %v756
        %v871 = vpack.c.b16 %v759, %v757
        %v872 = vpack.c.b16 %v762, %v760
        %v873 = vpack.c.b16 %v763, %v761
        %v874 = vpack.c.b16 %v766, %v764
        %v875 = vpack.c.b16 %v767, %v765
        %v876 = vpack.c.b16 %v770, %v768
        %v877 = vpack.c.b16 %v771, %v769
        %v878 = vpack.c.b16 %v774, %v772
        %v879 = vpack.c.b16 %v775, %v773
        %v880 = vpack.c.b16 %v778, %v776
        %v881 = vpack.c.b16 %v779, %v777
        %v882 = vpack.c.b16 %v782, %v780
        %v883 = vpack.c.b16 %v783, %v781
        %v884 = vpack.c.b16 %v786, %v784
        %v885 = vpack.c.b16 %v787, %v785
        %vm984 = vcmask 130048
        %v986 = vsel %vm984, %v395, 0
        %988 = vmatprep.subr.bf16.mxu0 %v789
        %989 = vmatpush1.bf16.msra.mxu0 %v788
        %990 = vmatprep.subr.bf16.mxu0 %v791
        %991 = vmatpush1.bf16.msra.mxu0 %v790
        %992 = vmatprep.subr.bf16.mxu0 %v793
        %993 = vmatpush1.bf16.msra.mxu0 %v792
        %994 = vmatprep.subr.bf16.mxu0 %v795
        %995 = vmatpush1.bf16.msra.mxu0 %v794
        %996 = vmatprep.subr.bf16.mxu0 %v797
        %997 = vmatpush1.bf16.msra.mxu0 %v796
        %998 = vmatprep.subr.bf16.mxu0 %v799
        %999 = vmatpush1.bf16.msra.mxu0 %v798
        %1000 = vmatprep.subr.bf16.mxu0 %v801
        %1001 = vmatpush1.bf16.msra.mxu0 %v800
        %1002 = vmatprep.subr.bf16.mxu0 %v803
        %1003 = vmatpush1.bf16.msra.mxu0 %v802
        %1004 = vmatprep.subr.bf16.mxu0 %v805
        %1005 = vmatpush1.bf16.msra.mxu0 %v804
        %1006 = vmatprep.subr.bf16.mxu0 %v807
        %1007 = vmatpush1.bf16.msra.mxu0 %v806
        %1008 = vmatprep.subr.bf16.mxu0 %v809
        %1009 = vmatpush1.bf16.msra.mxu0 %v808
        %1010 = vmatprep.subr.bf16.mxu0 %v811
        %1011 = vmatpush1.bf16.msra.mxu0 %v810
        %1012 = vmatprep.subr.bf16.mxu0 %v813
        %1013 = vmatpush1.bf16.msra.mxu0 %v812
        %1014 = vmatprep.subr.bf16.mxu0 %v815
        %1015 = vmatpush1.bf16.msra.mxu0 %v814
        %1016 = vmatprep.subr.bf16.mxu0 %v817
        %1017 = vmatpush1.bf16.msra.mxu0 %v816
        %1018 = vmatprep.subr.bf16.mxu0 %v819
        %1019 = vmatpush1.bf16.msra.mxu0 %v818
        %1020 = vmatprep.mubr.bf16.mxu0 %v390
        %1021 = vmatmul.mubr.bf16.gmra.mrb[0].mxu0 %v389
        %v1022 = vpop.f32.mrb[0].mxu0
        %v1023 = vadd.f32 0.0, %v1022
        %v1024 = vpop.f32.mrb[0].mxu0
        %v1025 = vadd.f32 0.0, %v1024
        %v1026 = vpop.f32.mrb[0].mxu0
        %v1027 = vadd.f32 0.0, %v1026
        %v1028 = vpop.f32.mrb[0].mxu0
        %v1029 = vadd.f32 0.0, %v1028
        %1030 = vdwg.mxu0
        %1031 = vmatprep.subr.bf16.mxu0 %v821
        %1032 = vmatpush1.bf16.msra.mxu0 %v820
        %1033 = vmatprep.subr.bf16.mxu0 %v823
        %1034 = vmatpush1.bf16.msra.mxu0 %v822
        %1035 = vmatprep.subr.bf16.mxu0 %v825
        %1036 = vmatpush1.bf16.msra.mxu0 %v824
        %1037 = vmatprep.subr.bf16.mxu0 %v827
        %1038 = vmatpush1.bf16.msra.mxu0 %v826
        %1039 = vmatprep.subr.bf16.mxu0 %v829
        %1040 = vmatpush1.bf16.msra.mxu0 %v828
        %1041 = vmatprep.subr.bf16.mxu0 %v831
        %1042 = vmatpush1.bf16.msra.mxu0 %v830
        %1043 = vmatprep.subr.bf16.mxu0 %v833
        %1044 = vmatpush1.bf16.msra.mxu0 %v832
        %1045 = vmatprep.subr.bf16.mxu0 %v835
        %1046 = vmatpush1.bf16.msra.mxu0 %v834
        %1047 = vmatprep.subr.bf16.mxu0 %v837
        %1048 = vmatpush1.bf16.msra.mxu0 %v836
        %1049 = vmatprep.subr.bf16.mxu0 %v839
        %1050 = vmatpush1.bf16.msra.mxu0 %v838
        %1051 = vmatprep.subr.bf16.mxu0 %v841
        %1052 = vmatpush1.bf16.msra.mxu0 %v840
        %1053 = vmatprep.subr.bf16.mxu0 %v843
        %1054 = vmatpush1.bf16.msra.mxu0 %v842
        %1055 = vmatprep.subr.bf16.mxu0 %v845
        %1056 = vmatpush1.bf16.msra.mxu0 %v844
        %1057 = vmatprep.subr.bf16.mxu0 %v847
        %1058 = vmatpush1.bf16.msra.mxu0 %v846
        %1059 = vmatprep.subr.bf16.mxu0 %v849
        %1060 = vmatpush1.bf16.msra.mxu0 %v848
        %1061 = vmatprep.subr.bf16.mxu0 %v851
        %1062 = vmatpush1.bf16.msra.mxu0 %v850
        %1063 = vmatprep.mubr.bf16.mxu0 %v392
        %1064 = vmatmul.mubr.bf16.gmra.mrb[0].mxu0 %v391
        %v1065 = vpop.f32.mrb[0].mxu0
        %v1066 = vadd.f32 %v1023, %v1065
        %v1067 = vpop.f32.mrb[0].mxu0
        %v1068 = vadd.f32 %v1025, %v1067
        %v1069 = vpop.f32.mrb[0].mxu0
        %v1070 = vadd.f32 %v1027, %v1069
        %v1071 = vpop.f32.mrb[0].mxu0
        %v1072 = vadd.f32 %v1029, %v1071
        %1073 = vdwg.mxu0
        %1074 = vmatprep.subr.bf16.mxu0 %v853
        %1075 = vmatpush1.bf16.msra.mxu0 %v852
        %1076 = vmatprep.subr.bf16.mxu0 %v855
        %1077 = vmatpush1.bf16.msra.mxu0 %v854
        %1078 = vmatprep.subr.bf16.mxu0 %v857
        %1079 = vmatpush1.bf16.msra.mxu0 %v856
        %1080 = vmatprep.subr.bf16.mxu0 %v859
        %1081 = vmatpush1.bf16.msra.mxu0 %v858
        %1082 = vmatprep.subr.bf16.mxu0 %v861
        %1083 = vmatpush1.bf16.msra.mxu0 %v860
        %1084 = vmatprep.subr.bf16.mxu0 %v863
        %1085 = vmatpush1.bf16.msra.mxu0 %v862
        %1086 = vmatprep.subr.bf16.mxu0 %v865
        %1087 = vmatpush1.bf16.msra.mxu0 %v864
        %1088 = vmatprep.subr.bf16.mxu0 %v867
        %1089 = vmatpush1.bf16.msra.mxu0 %v866
        %1090 = vmatprep.subr.bf16.mxu0 %v869
        %1091 = vmatpush1.bf16.msra.mxu0 %v868
        %1092 = vmatprep.subr.bf16.mxu0 %v871
        %1093 = vmatpush1.bf16.msra.mxu0 %v870
        %1094 = vmatprep.subr.bf16.mxu0 %v873
        %1095 = vmatpush1.bf16.msra.mxu0 %v872
        %1096 = vmatprep.subr.bf16.mxu0 %v875
        %1097 = vmatpush1.bf16.msra.mxu0 %v874
        %1098 = vmatprep.subr.bf16.mxu0 %v877
        %1099 = vmatpush1.bf16.msra.mxu0 %v876
        %1100 = vmatprep.subr.bf16.mxu0 %v879
        %1101 = vmatpush1.bf16.msra.mxu0 %v878
        %1102 = vmatprep.subr.bf16.mxu0 %v881
        %1103 = vmatpush1.bf16.msra.mxu0 %v880
        %1104 = vmatprep.subr.bf16.mxu0 %v883
        %1105 = vmatpush1.bf16.msra.mxu0 %v882
        %1106 = vmatprep.mubr.bf16.mxu0 %v394
        %1107 = vmatmul.mubr.bf16.gmra.mrb[0].mxu0 %v393
        %v1108 = vpop.f32.mrb[0].mxu0
        %v1109 = vadd.f32 %v1066, %v1108
        %v1110 = vpop.f32.mrb[0].mxu0
        %v1111 = vadd.f32 %v1068, %v1110
        %v1112 = vpop.f32.mrb[0].mxu0
        %v1113 = vadd.f32 %v1070, %v1112
        %v1114 = vpop.f32.mrb[0].mxu0
        %v1115 = vadd.f32 %v1072, %v1114
        %1116 = vdwg.mxu0
        %1117 = vmatprep.subr.bf16.mxu0 %v885
        %1118 = vmatpush1.bf16.msra.mxu0 %v884
        %1119 = vmatprep.subr.bf16.mxu0 0
        %1120 = vmatpush1.bf16.msra.mxu0 0
        %1121 = vmatprep.subr.bf16.mxu0 0
        %1122 = vmatpush1.bf16.msra.mxu0 0
        %1123 = vmatprep.subr.bf16.mxu0 0
        %1124 = vmatpush1.bf16.msra.mxu0 0
        %1125 = vmatprep.subr.bf16.mxu0 0
        %1126 = vmatpush1.bf16.msra.mxu0 0
        %1127 = vmatprep.subr.bf16.mxu0 0
        %1128 = vmatpush1.bf16.msra.mxu0 0
        %1129 = vmatprep.subr.bf16.mxu0 0
        %1130 = vmatpush1.bf16.msra.mxu0 0
        %1131 = vmatprep.subr.bf16.mxu0 0
        %1132 = vmatpush1.bf16.msra.mxu0 0
        %1133 = vmatprep.subr.bf16.mxu0 0
        %1134 = vmatpush1.bf16.msra.mxu0 0
        %1135 = vmatprep.subr.bf16.mxu0 0
        %1136 = vmatpush1.bf16.msra.mxu0 0
        %1137 = vmatprep.subr.bf16.mxu0 0
        %1138 = vmatpush1.bf16.msra.mxu0 0
        %1139 = vmatprep.subr.bf16.mxu0 0
        %1140 = vmatpush1.bf16.msra.mxu0 0
        %1141 = vmatprep.subr.bf16.mxu0 0
        %1142 = vmatpush1.bf16.msra.mxu0 0
        %1143 = vmatprep.subr.bf16.mxu0 0
        %1144 = vmatpush1.bf16.msra.mxu0 0
        %1145 = vmatprep.subr.bf16.mxu0 0
        %1146 = vmatpush1.bf16.msra.mxu0 0
        %1147 = vmatprep.subr.bf16.mxu0 0
        %1148 = vmatpush1.bf16.msra.mxu0 0
        %1149 = vmatprep.mubr.bf16.mxu0 0
        %1150 = vmatmul.mubr.bf16.gmra.mrb[0].mxu0 %v986
        %v1151 = vpop.f32.mrb[0].mxu0
        %v1152 = vadd.f32 %v1109, %v1151
        %v1153 = vpop.f32.mrb[0].mxu0
        %v1154 = vadd.f32 %v1111, %v1153
        %v1155 = vpop.f32.mrb[0].mxu0
        %v1156 = vadd.f32 %v1113, %v1155
        %v1157 = vpop.f32.mrb[0].mxu0
        %v1158 = vadd.f32 %v1115, %v1157
        %1159 = vdwg.mxu0
        %s1160 = smul.u32 %s25, 16
        %s1161 = sshra.s32 %s1160, 3
        %s1162 = sand.u32 %s1160, 7
        %s1163 = smul.u32 %s1161, 2
        %s1164 = smul.addr %s1163, 8
        %s1165 = scalar_lea.vmem [#allocation2], %s1164
        %1166 = vst [vmem:[%s1165] sm:$0xff] %v1152
        %1167 = vst [vmem:[%s1165 + $0x8] sm:$0xff] %v1154
        %1168 = vst [vmem:[%s1165 + $0x10] sm:$0xff] %v1156
        %1169 = vst [vmem:[%s1165 + $0x18] sm:$0xff] %v1158
        %p1170 = scmp.eq.s32.totalorder %s25, 1
        // Predicated region
        $region77: #{tpu_custom_call.1} parent=47 // pred_check
          %p1171 = pneg %p1170
        $region78: #{tpu_custom_call.1} parent=47 // pred_check_branch
          %1173 = sbr.rel (%p1171) target = $region80
        $region79: #{tpu_custom_call.1} parent=47 // pred_region
          %v1174 = vld [vmem:[#allocation2] sm:$0xff]
          %v1175 = vld [vmem:[#allocation2 + $0x8] sm:$0xff]
          %v1176 = vld [vmem:[#allocation2 + $0x10] sm:$0xff]
          %v1177 = vld [vmem:[#allocation2 + $0x18] sm:$0xff]
          %v1178 = vld [vmem:[#allocation2 + $0x20] sm:$0xff]
          %v1179 = vld [vmem:[#allocation2 + $0x28] sm:$0xff]
          %v1180 = vld [vmem:[#allocation2 + $0x30] sm:$0xff]
          %v1181 = vld [vmem:[#allocation2 + $0x38] sm:$0xff]
          %v1182 = vld [vmem:[#allocation14] ss:$8 sm:$0x3]
          %s1183 = scalar_lea.vmem [#allocation14], 1
          %v1184 = vld [vmem:[%s1183] ss:$8 sm:$0x3]
          %v1185 = vadd.f32 %v1174, %v1176
          %v1186 = vadd.f32 %v1185, %v1178
          %v1187 = vadd.f32 %v1186, %v1180
          %v1188 = vrot.slane %v1187, 4
          %v1189 = vadd.f32 %v1187, %v1188
          %v1190 = vrot.slane %v1189, 2
          %v1191 = vadd.f32 %v1189, %v1190
          %v1192 = vrot.slane %v1191, 1
          %v1193 = vadd.f32 %v1191, %v1192
          %v1194 = vadd.f32 %v1175, %v1177
          %v1195 = vadd.f32 %v1194, %v1179
          %v1196 = vadd.f32 %v1195, %v1181
          %v1197 = vrot.slane %v1196, 4
          %v1198 = vadd.f32 %v1196, %v1197
          %v1199 = vrot.slane %v1198, 2
          %v1200 = vadd.f32 %v1198, %v1199
          %v1201 = vrot.slane %v1200, 1
          %v1202 = vadd.f32 %v1200, %v1201
          %v1203 = vmul.f32 %v1193, 0.03125
          %v1204 = vmul.f32 %v1202, 0.03125
          %v1205 = vmul.f32 %v1174, %v1174
          %v1206 = vmul.f32 %v1175, %v1175
          %v1207 = vmul.f32 %v1176, %v1176
          %v1208 = vmul.f32 %v1177, %v1177
          %v1209 = vmul.f32 %v1178, %v1178
          %v1210 = vmul.f32 %v1179, %v1179
          %v1211 = vmul.f32 %v1180, %v1180
          %v1212 = vmul.f32 %v1181, %v1181
          %v1213 = vadd.f32 %v1205, %v1207
          %v1214 = vadd.f32 %v1213, %v1209
          %v1215 = vadd.f32 %v1214, %v1211
          %v1216 = vrot.slane %v1215, 4
          %v1217 = vadd.f32 %v1215, %v1216
          %v1218 = vrot.slane %v1217, 2
          %v1219 = vadd.f32 %v1217, %v1218
          %v1220 = vrot.slane %v1219, 1
          %v1221 = vadd.f32 %v1219, %v1220
          %v1222 = vadd.f32 %v1206, %v1208
          %v1223 = vadd.f32 %v1222, %v1210
          %v1224 = vadd.f32 %v1223, %v1212
          %v1225 = vrot.slane %v1224, 4
          %v1226 = vadd.f32 %v1224, %v1225
          %v1227 = vrot.slane %v1226, 2
          %v1228 = vadd.f32 %v1226, %v1227
          %v1229 = vrot.slane %v1228, 1
          %v1230 = vadd.f32 %v1228, %v1229
          %v1231 = vmul.f32 %v1221, 0.03125
          %v1232 = vmul.f32 %v1230, 0.03125
          %v1233 = vmul.f32 %v1203, %v1203
          %v1234 = vmul.f32 %v1204, %v1204
          %v1235 = vsub.f32 %v1231, %v1233
          %v1236 = vsub.f32 %v1232, %v1234
          %v1237 = vmax.f32 %v1235, 0.0
          %v1238 = vmax.f32 %v1236, 0.0
          %v1239 = vmul.f32 %v1182, 0.5
          %v1240 = vadd.f32 %v1237, 1e-05
          %v1241 = vadd.f32 %v1238, 1e-05
          %v1242 = vrsqrt.pop %v1240
          %v1243 = vrsqrt.pop %v1241
          %v1246 = vcombine.low %v1242, %v1243
          %v1248 = vunpack.c.l.s4 1966171168
          %v1249 = vunpack.c.0.s8 %v1248
          %v1250 = vlaneseq
          %v1251 = vshrl.u32 %v1250, 7
          %v1252 = vsub.s32 %v1249, %v1251
          %v1253 = vrot.slane %v1246, %v1252
          %v1255 = vunpack.c.l.s4 1966171168
          %v1256 = vunpack.c.0.s8 %v1255
          %v1257 = vlaneseq
          %v1258 = vshrl.u32 %v1257, 7
          %v1259 = vsub.s32 %v1256, %v1258
          %v1260 = vrot.slane %v1253, %v1259
          %v1262 = vmul.f32 %v1239, %v1260
          %v1263 = vmul.f32 %v1184, 0.5
          %v1265 = vlaneseq
          %v1266 = vshrl.u32 %v1265, 7
          %v1267 = vsub.s32 0, %v1266
          %v1268 = vrot.slane %v1262, %v1267
          %v1269 = vlaneseq
          %v1270 = vshrl.u32 %v1269, 7
          %v1271 = vsub.s32 1, %v1270
          %v1272 = vrot.slane %v1262, %v1271
          %v1275 = vmul.f32 %v1203, %v1268
          %v1276 = vmul.f32 %v1204, %v1272
          %v1279 = vcombine.low %v1275, %v1276
          %v1281 = vunpack.c.l.s4 1966171168
          %v1282 = vunpack.c.0.s8 %v1281
          %v1283 = vlaneseq
          %v1284 = vshrl.u32 %v1283, 7
          %v1285 = vsub.s32 %v1282, %v1284
          %v1286 = vrot.slane %v1279, %v1285
          %v1288 = vunpack.c.l.s4 1966171168
          %v1289 = vunpack.c.0.s8 %v1288
          %v1290 = vlaneseq
          %v1291 = vshrl.u32 %v1290, 7
          %v1292 = vsub.s32 %v1289, %v1291
          %v1293 = vrot.slane %v1286, %v1292
          %v1295 = vsub.f32 %v1263, %v1293
          %v1296 = vmul.f32 %v1174, %v1268
          %v1297 = vmul.f32 %v1175, %v1272
          %v1298 = vmul.f32 %v1176, %v1268
          %v1299 = vmul.f32 %v1177, %v1272
          %v1300 = vmul.f32 %v1178, %v1268
          %v1301 = vmul.f32 %v1179, %v1272
          %v1302 = vmul.f32 %v1180, %v1268
          %v1303 = vmul.f32 %v1181, %v1272
          %v1305 = vlaneseq
          %v1306 = vshrl.u32 %v1305, 7
          %v1307 = vsub.s32 0, %v1306
          %v1308 = vrot.slane %v1295, %v1307
          %v1309 = vlaneseq
          %v1310 = vshrl.u32 %v1309, 7
          %v1311 = vsub.s32 1, %v1310
          %v1312 = vrot.slane %v1295, %v1311
          %v1315 = vadd.f32 %v1296, %v1308
          %v1316 = vadd.f32 %v1297, %v1312
          %v1317 = vadd.f32 %v1298, %v1308
          %v1318 = vadd.f32 %v1299, %v1312
          %v1319 = vadd.f32 %v1300, %v1308
          %v1320 = vadd.f32 %v1301, %v1312
          %v1321 = vadd.f32 %v1302, %v1308
          %v1322 = vadd.f32 %v1303, %v1312
          %v1323 = vtanh.pop %v1315
          %v1324 = vtanh.pop %v1316
          %v1325 = vtanh.pop %v1317
          %v1326 = vtanh.pop %v1318
          %v1327 = vtanh.pop %v1319
          %v1328 = vtanh.pop %v1320
          %v1329 = vtanh.pop %v1321
          %v1330 = vtanh.pop %v1322
          %v1331 = vpack.c.bf16 %v1325, %v1323
          %v1332 = vpack.c.bf16 %v1326, %v1324
          %v1333 = vpack.c.bf16 %v1329, %v1327
          %v1334 = vpack.c.bf16 %v1330, %v1328
          %v1335 = vld [vmem:[#allocation8] sm:$0xf]
          %v1336 = vld [vmem:[#allocation8 + $0x4] sm:$0xf]
          %v1337 = vld [vmem:[#allocation8 + $0x8] sm:$0xf]
          %v1338 = vld [vmem:[#allocation8 + $0xc] sm:$0xf]
          %v1339 = vld [vmem:[#allocation8 + $0x10] sm:$0xf]
          %v1340 = vld [vmem:[#allocation8 + $0x14] sm:$0xf]
          %v1341 = vld [vmem:[#allocation8 + $0x18] sm:$0xf]
          %v1342 = vld [vmem:[#allocation8 + $0x1c] sm:$0xf]
          %v1343 = vld [vmem:[#allocation8 + $0x20] sm:$0xf]
          %v1344 = vld [vmem:[#allocation8 + $0x24] sm:$0xf]
          %v1345 = vld [vmem:[#allocation8 + $0x28] sm:$0xf]
          %v1346 = vld [vmem:[#allocation8 + $0x2c] sm:$0xf]
          %v1347 = vld [vmem:[#allocation8 + $0x30] sm:$0xf]
          %v1348 = vld [vmem:[#allocation8 + $0x34] sm:$0xf]
          %v1349 = vld [vmem:[#allocation8 + $0x38] sm:$0xf]
          %v1350 = vld [vmem:[#allocation8 + $0x3c] sm:$0xf]
          %v1351 = vld [vmem:[#allocation8 + $0x40] sm:$0xf]
          %v1352 = vld [vmem:[#allocation8 + $0x44] sm:$0xf]
          %v1353 = vld [vmem:[#allocation8 + $0x48] sm:$0xf]
          %v1354 = vld [vmem:[#allocation8 + $0x4c] sm:$0xf]
          %v1355 = vld [vmem:[#allocation8 + $0x50] sm:$0xf]
          %v1356 = vld [vmem:[#allocation8 + $0x54] sm:$0xf]
          %v1357 = vld [vmem:[#allocation8 + $0x58] sm:$0xf]
          %v1358 = vld [vmem:[#allocation8 + $0x5c] sm:$0xf]
          %v1359 = vld [vmem:[#allocation8 + $0x60] sm:$0xf]
          %v1360 = vld [vmem:[#allocation8 + $0x64] sm:$0xf]
          %v1361 = vld [vmem:[#allocation8 + $0x68] sm:$0xf]
          %v1362 = vld [vmem:[#allocation8 + $0x6c] sm:$0xf]
          %v1363 = vld [vmem:[#allocation8 + $0x70] sm:$0xf]
          %v1364 = vld [vmem:[#allocation8 + $0x74] sm:$0xf]
          %v1365 = vld [vmem:[#allocation8 + $0x78] sm:$0xf]
          %v1366 = vld [vmem:[#allocation8 + $0x7c] sm:$0xf]
          %v1399 = vunpack.c.l.b16 %v1335
          %v1400 = vunpack.c.l.b16 %v1336
          %v1401 = vunpack.c.l.b16 %v1337
          %v1402 = vunpack.c.l.b16 %v1338
          %v1403 = vunpack.c.l.b16 %v1339
          %v1404 = vunpack.c.l.b16 %v1340
          %v1405 = vunpack.c.l.b16 %v1341
          %v1406 = vunpack.c.l.b16 %v1342
          %v1407 = vunpack.c.l.b16 %v1343
          %v1408 = vunpack.c.l.b16 %v1344
          %v1409 = vunpack.c.l.b16 %v1345
          %v1410 = vunpack.c.l.b16 %v1346
          %v1411 = vunpack.c.l.b16 %v1347
          %v1412 = vunpack.c.l.b16 %v1348
          %v1413 = vunpack.c.l.b16 %v1349
          %v1414 = vunpack.c.l.b16 %v1350
          %v1415 = vunpack.c.l.b16 %v1351
          %v1416 = vunpack.c.l.b16 %v1352
          %v1417 = vunpack.c.l.b16 %v1353
          %v1418 = vunpack.c.l.b16 %v1354
          %v1419 = vunpack.c.l.b16 %v1355
          %v1420 = vunpack.c.l.b16 %v1356
          %v1421 = vunpack.c.l.b16 %v1357
          %v1422 = vunpack.c.l.b16 %v1358
          %v1423 = vunpack.c.l.b16 %v1359
          %v1424 = vunpack.c.l.b16 %v1360
          %v1425 = vunpack.c.l.b16 %v1361
          %v1426 = vunpack.c.l.b16 %v1362
          %v1427 = vunpack.c.l.b16 %v1363
          %v1428 = vunpack.c.l.b16 %v1364
          %v1429 = vunpack.c.l.b16 %v1365
          %v1430 = vunpack.c.l.b16 %v1366
          %v1431 = vpack.c.b16 %v1400, %v1399
          %v1432 = vpack.c.b16 %v1402, %v1401
          %v1433 = vpack.c.b16 %v1404, %v1403
          %v1434 = vpack.c.b16 %v1406, %v1405
          %v1435 = vpack.c.b16 %v1408, %v1407
          %v1436 = vpack.c.b16 %v1410, %v1409
          %v1437 = vpack.c.b16 %v1412, %v1411
          %v1438 = vpack.c.b16 %v1414, %v1413
          %v1439 = vpack.c.b16 %v1416, %v1415
          %v1440 = vpack.c.b16 %v1418, %v1417
          %v1441 = vpack.c.b16 %v1420, %v1419
          %v1442 = vpack.c.b16 %v1422, %v1421
          %v1443 = vpack.c.b16 %v1424, %v1423
          %v1444 = vpack.c.b16 %v1426, %v1425
          %v1445 = vpack.c.b16 %v1428, %v1427
          %v1446 = vpack.c.b16 %v1430, %v1429
          %1463 = vmatprep.subr.bf16.mxu0 0
          %1464 = vmatpush1.bf16.msra.mxu0 %v1431
          %1465 = vmatprep.subr.bf16.mxu0 0
          %1466 = vmatpush1.bf16.msra.mxu0 %v1432
          %1467 = vmatprep.subr.bf16.mxu0 0
          %1468 = vmatpush1.bf16.msra.mxu0 %v1433
          %1469 = vmatprep.subr.bf16.mxu0 0
          %1470 = vmatpush1.bf16.msra.mxu0 %v1434
          %1471 = vmatprep.subr.bf16.mxu0 0
          %1472 = vmatpush1.bf16.msra.mxu0 %v1435
          %1473 = vmatprep.subr.bf16.mxu0 0
          %1474 = vmatpush1.bf16.msra.mxu0 %v1436
          %1475 = vmatprep.subr.bf16.mxu0 0
          %1476 = vmatpush1.bf16.msra.mxu0 %v1437
          %1477 = vmatprep.subr.bf16.mxu0 0
          %1478 = vmatpush1.bf16.msra.mxu0 %v1438
          %1479 = vmatprep.subr.bf16.mxu0 0
          %1480 = vmatpush1.bf16.msra.mxu0 %v1439
          %1481 = vmatprep.subr.bf16.mxu0 0
          %1482 = vmatpush1.bf16.msra.mxu0 %v1440
          %1483 = vmatprep.subr.bf16.mxu0 0
          %1484 = vmatpush1.bf16.msra.mxu0 %v1441
          %1485 = vmatprep.subr.bf16.mxu0 0
          %1486 = vmatpush1.bf16.msra.mxu0 %v1442
          %1487 = vmatprep.subr.bf16.mxu0 0
          %1488 = vmatpush1.bf16.msra.mxu0 %v1443
          %1489 = vmatprep.subr.bf16.mxu0 0
          %1490 = vmatpush1.bf16.msra.mxu0 %v1444
          %1491 = vmatprep.subr.bf16.mxu0 0
          %1492 = vmatpush1.bf16.msra.mxu0 %v1445
          %1493 = vmatprep.subr.bf16.mxu0 0
          %1494 = vmatpush1.bf16.msra.mxu0 %v1446
          %1495 = vmatprep.mubr.bf16.mxu0 %v1332
          %1496 = vmatmul.mubr.bf16.gmra.mrb[0].mxu0 %v1331
          %v1497 = vpop.f32.mrb[0].mxu0
          %v1498 = vadd.f32 0.0, %v1497
          %v1499 = vpop.f32.mrb[0].mxu0
          %v1500 = vpop.f32.mrb[0].mxu0
          %v1501 = vadd.f32 0.0, %v1500
          %v1502 = vpop.f32.mrb[0].mxu0
          %1503 = vmatprep.mubr.bf16.mxu0 %v1334
          %1504 = vmatmul.mubr.bf16.gmra.mrb[0].mxu0 %v1333
          %v1505 = vpop.f32.mrb[0].mxu0
          %v1506 = vadd.f32 0.0, %v1505
          %v1507 = vpop.f32.mrb[0].mxu0
          %v1508 = vpop.f32.mrb[0].mxu0
          %v1509 = vadd.f32 0.0, %v1508
          %v1510 = vpop.f32.mrb[0].mxu0
          %1511 = vdwg.mxu0
          %v1512 = vld [vmem:[#allocation14 + $0x2] ss:$0 sm:$0xff]
          %v1513 = vld [vmem:[#allocation14 + $0x3] ss:$0 sm:$0xff]
          %v1514 = vadd.f32 %v1498, %v1501
          %v1515 = vadd.f32 %v1514, %v1506
          %v1516 = vadd.f32 %v1515, %v1509
          %v1517 = vrot.slane %v1516, 4
          %v1518 = vadd.f32 %v1516, %v1517
          %v1519 = vrot.slane %v1518, 2
          %v1520 = vadd.f32 %v1518, %v1519
          %v1521 = vrot.slane %v1520, 1
          %v1522 = vadd.f32 %v1520, %v1521
          %v1523 = vmul.f32 %v1522, 0.03125
          %v1524 = vmul.f32 %v1498, %v1498
          %v1525 = vmul.f32 %v1501, %v1501
          %v1526 = vmul.f32 %v1506, %v1506
          %v1527 = vmul.f32 %v1509, %v1509
          %v1528 = vadd.f32 %v1524, %v1525
          %v1529 = vadd.f32 %v1528, %v1526
          %v1530 = vadd.f32 %v1529, %v1527
          %v1531 = vrot.slane %v1530, 4
          %v1532 = vadd.f32 %v1530, %v1531
          %v1533 = vrot.slane %v1532, 2
          %v1534 = vadd.f32 %v1532, %v1533
          %v1535 = vrot.slane %v1534, 1
          %v1536 = vadd.f32 %v1534, %v1535
          %v1537 = vmul.f32 %v1536, 0.03125
          %v1538 = vmul.f32 %v1523, %v1523
          %v1539 = vsub.f32 %v1537, %v1538
          %v1540 = vmax.f32 %v1539, 0.0
          %v1541 = vmul.f32 %v1512, 0.5
          %v1542 = vadd.f32 %v1540, 1e-05
          %v1543 = vrsqrt.pop %v1542
          %v1544 = vmul.f32 %v1541, %v1543
          %v1545 = vmul.f32 %v1513, 0.5
          %v1546 = vmul.f32 %v1523, %v1544
          %v1547 = vsub.f32 %v1545, %v1546
          %v1548 = vmul.f32 %v1498, %v1544
          %v1549 = vmul.f32 %v1501, %v1544
          %v1550 = vmul.f32 %v1506, %v1544
          %v1551 = vmul.f32 %v1509, %v1544
          %v1552 = vadd.f32 %v1548, %v1547
          %v1553 = vadd.f32 %v1549, %v1547
          %v1554 = vadd.f32 %v1550, %v1547
          %v1555 = vadd.f32 %v1551, %v1547
          %v1556 = vtanh.pop %v1552
          %v1557 = vtanh.pop %v1553
          %v1558 = vtanh.pop %v1554
          %v1559 = vtanh.pop %v1555
          %v1560 = vpack.c.bf16 %v1557, %v1556
          %v1561 = vpack.c.bf16 %v1559, %v1558
          %v1562 = vld [vmem:[#allocation9] sm:$0xf]
          %v1563 = vld [vmem:[#allocation9 + $0x4] sm:$0xf]
          %v1564 = vld [vmem:[#allocation9 + $0x8] sm:$0xf]
          %v1565 = vld [vmem:[#allocation9 + $0xc] sm:$0xf]
          %v1566 = vld [vmem:[#allocation9 + $0x10] sm:$0xf]
          %v1567 = vld [vmem:[#allocation9 + $0x14] sm:$0xf]
          %v1568 = vld [vmem:[#allocation9 + $0x18] sm:$0xf]
          %v1569 = vld [vmem:[#allocation9 + $0x1c] sm:$0xf]
          %v1570 = vld [vmem:[#allocation9 + $0x20] sm:$0xf]
          %v1571 = vld [vmem:[#allocation9 + $0x24] sm:$0xf]
          %v1572 = vld [vmem:[#allocation9 + $0x28] sm:$0xf]
          %v1573 = vld [vmem:[#allocation9 + $0x2c] sm:$0xf]
          %v1574 = vld [vmem:[#allocation9 + $0x30] sm:$0xf]
          %v1575 = vld [vmem:[#allocation9 + $0x34] sm:$0xf]
          %v1576 = vld [vmem:[#allocation9 + $0x38] sm:$0xf]
          %v1577 = vld [vmem:[#allocation9 + $0x3c] sm:$0xf]
          %v1594 = vunpack.c.l.b16 %v1562
          %v1595 = vunpack.c.l.b16 %v1563
          %v1596 = vunpack.c.l.b16 %v1564
          %v1597 = vunpack.c.l.b16 %v1565
          %v1598 = vunpack.c.l.b16 %v1566
          %v1599 = vunpack.c.l.b16 %v1567
          %v1600 = vunpack.c.l.b16 %v1568
          %v1601 = vunpack.c.l.b16 %v1569
          %v1602 = vunpack.c.l.b16 %v1570
          %v1603 = vunpack.c.l.b16 %v1571
          %v1604 = vunpack.c.l.b16 %v1572
          %v1605 = vunpack.c.l.b16 %v1573
          %v1606 = vunpack.c.l.b16 %v1574
          %v1607 = vunpack.c.l.b16 %v1575
          %v1608 = vunpack.c.l.b16 %v1576
          %v1609 = vunpack.c.l.b16 %v1577
          %v1610 = vpack.c.b16 %v1595, %v1594
          %v1611 = vpack.c.b16 %v1597, %v1596
          %v1612 = vpack.c.b16 %v1599, %v1598
          %v1613 = vpack.c.b16 %v1601, %v1600
          %v1614 = vpack.c.b16 %v1603, %v1602
          %v1615 = vpack.c.b16 %v1605, %v1604
          %v1616 = vpack.c.b16 %v1607, %v1606
          %v1617 = vpack.c.b16 %v1609, %v1608
          %1626 = vmatprep.subr.bf16.mxu0 0
          %1627 = vmatpush1.bf16.msra.mxu0 %v1610
          %1628 = vmatprep.subr.bf16.mxu0 0
          %1629 = vmatpush1.bf16.msra.mxu0 %v1611
          %1630 = vmatprep.subr.bf16.mxu0 0
          %1631 = vmatpush1.bf16.msra.mxu0 %v1612
          %1632 = vmatprep.subr.bf16.mxu0 0
          %1633 = vmatpush1.bf16.msra.mxu0 %v1613
          %1634 = vmatprep.subr.bf16.mxu0 0
          %1635 = vmatpush1.bf16.msra.mxu0 %v1614
          %1636 = vmatprep.subr.bf16.mxu0 0
          %1637 = vmatpush1.bf16.msra.mxu0 %v1615
          %1638 = vmatprep.subr.bf16.mxu0 0
          %1639 = vmatpush1.bf16.msra.mxu0 %v1616
          %1640 = vmatprep.subr.bf16.mxu0 0
          %1641 = vmatpush1.bf16.msra.mxu0 %v1617
          %1642 = vmatprep.subr.bf16.mxu0 0
          %1643 = vmatpush1.bf16.msra.mxu0 0
          %1644 = vmatprep.subr.bf16.mxu0 0
          %1645 = vmatpush1.bf16.msra.mxu0 0
          %1646 = vmatprep.subr.bf16.mxu0 0
          %1647 = vmatpush1.bf16.msra.mxu0 0
          %1648 = vmatprep.subr.bf16.mxu0 0
          %1649 = vmatpush1.bf16.msra.mxu0 0
          %1650 = vmatprep.subr.bf16.mxu0 0
          %1651 = vmatpush1.bf16.msra.mxu0 0
          %1652 = vmatprep.subr.bf16.mxu0 0
          %1653 = vmatpush1.bf16.msra.mxu0 0
          %1654 = vmatprep.subr.bf16.mxu0 0
          %1655 = vmatpush1.bf16.msra.mxu0 0
          %1656 = vmatprep.subr.bf16.mxu0 0
          %1657 = vmatpush1.bf16.msra.mxu0 0
          %1658 = vmatprep.mubr.bf16.mxu0 0
          %1659 = vmatmul.mubr.bf16.gmra.mrb[0].mxu0 %v1560
          %v1660 = vpop.f32.mrb[0].mxu0
          %v1661 = vadd.f32 0.0, %v1660
          %v1662 = vpop.f32.mrb[0].mxu0
          %v1663 = vpop.f32.mrb[0].mxu0
          %v1664 = vadd.f32 0.0, %v1663
          %v1665 = vpop.f32.mrb[0].mxu0
          %1666 = vmatprep.mubr.bf16.mxu0 0
          %1667 = vmatmul.mubr.bf16.gmra.mrb[0].mxu0 %v1561
          %v1668 = vpop.f32.mrb[0].mxu0
          %v1669 = vadd.f32 0.0, %v1668
          %v1670 = vpop.f32.mrb[0].mxu0
          %v1671 = vpop.f32.mrb[0].mxu0
          %v1672 = vadd.f32 0.0, %v1671
          %v1673 = vpop.f32.mrb[0].mxu0
          %1674 = vdwg.mxu0
          %v1675 = vld [vmem:[#allocation14 + $0x4] ss:$0 sm:$0xff]
          %v1676 = vld [vmem:[#allocation14 + $0x5] ss:$0 sm:$0xff]
          %v1677 = vadd.f32 %v1661, %v1664
          %v1678 = vadd.f32 %v1677, %v1669
          %v1679 = vadd.f32 %v1678, %v1672
          %v1680 = vrot.slane %v1679, 4
          %v1681 = vadd.f32 %v1679, %v1680
          %v1682 = vrot.slane %v1681, 2
          %v1683 = vadd.f32 %v1681, %v1682
          %v1684 = vrot.slane %v1683, 1
          %v1685 = vadd.f32 %v1683, %v1684
          %v1686 = vmul.f32 %v1685, 0.03125
          %v1687 = vmul.f32 %v1661, %v1661
          %v1688 = vmul.f32 %v1664, %v1664
          %v1689 = vmul.f32 %v1669, %v1669
          %v1690 = vmul.f32 %v1672, %v1672
          %v1691 = vadd.f32 %v1687, %v1688
          %v1692 = vadd.f32 %v1691, %v1689
          %v1693 = vadd.f32 %v1692, %v1690
          %v1694 = vrot.slane %v1693, 4
          %v1695 = vadd.f32 %v1693, %v1694
          %v1696 = vrot.slane %v1695, 2
          %v1697 = vadd.f32 %v1695, %v1696
          %v1698 = vrot.slane %v1697, 1
          %v1699 = vadd.f32 %v1697, %v1698
          %v1700 = vmul.f32 %v1699, 0.03125
          %v1701 = vmul.f32 %v1686, %v1686
          %v1702 = vsub.f32 %v1700, %v1701
          %v1703 = vmax.f32 %v1702, 0.0
          %v1704 = vmul.f32 %v1675, 0.5
          %v1705 = vadd.f32 %v1703, 1e-05
          %v1706 = vrsqrt.pop %v1705
          %v1707 = vmul.f32 %v1704, %v1706
          %v1708 = vmul.f32 %v1676, 0.5
          %v1709 = vmul.f32 %v1686, %v1707
          %v1710 = vsub.f32 %v1708, %v1709
          %v1711 = vmul.f32 %v1661, %v1707
          %v1712 = vmul.f32 %v1664, %v1707
          %v1713 = vmul.f32 %v1669, %v1707
          %v1714 = vmul.f32 %v1672, %v1707
          %v1715 = vadd.f32 %v1711, %v1710
          %v1716 = vadd.f32 %v1712, %v1710
          %v1717 = vadd.f32 %v1713, %v1710
          %v1718 = vadd.f32 %v1714, %v1710
          %v1719 = vtanh.pop %v1715
          %v1720 = vtanh.pop %v1716
          %v1721 = vtanh.pop %v1717
          %v1722 = vtanh.pop %v1718
          %v1723 = vpack.c.bf16 %v1720, %v1719
          %v1724 = vpack.c.bf16 %v1722, %v1721
          %v1725 = vld [vmem:[#allocation11] sm:$0xf]
          %v1726 = vld [vmem:[#allocation11 + $0x4] sm:$0xf]
          %v1727 = vld [vmem:[#allocation11 + $0x8] sm:$0xf]
          %v1728 = vld [vmem:[#allocation11 + $0xc] sm:$0xf]
          %v1729 = vld [vmem:[#allocation11 + $0x10] sm:$0xf]
          %v1730 = vld [vmem:[#allocation11 + $0x14] sm:$0xf]
          %v1731 = vld [vmem:[#allocation11 + $0x18] sm:$0xf]
          %v1732 = vld [vmem:[#allocation11 + $0x1c] sm:$0xf]
          %v1733 = vld [vmem:[#allocation11 + $0x20] sm:$0xf]
          %v1734 = vld [vmem:[#allocation11 + $0x24] sm:$0xf]
          %v1735 = vld [vmem:[#allocation11 + $0x28] sm:$0xf]
          %v1736 = vld [vmem:[#allocation11 + $0x2c] sm:$0xf]
          %v1737 = vld [vmem:[#allocation11 + $0x30] sm:$0xf]
          %v1738 = vld [vmem:[#allocation11 + $0x34] sm:$0xf]
          %v1739 = vld [vmem:[#allocation11 + $0x38] sm:$0xf]
          %v1740 = vld [vmem:[#allocation11 + $0x3c] sm:$0xf]
          %v1757 = vunpack.c.l.b16 %v1725
          %v1758 = vunpack.c.l.b16 %v1726
          %v1759 = vunpack.c.l.b16 %v1727
          %v1760 = vunpack.c.l.b16 %v1728
          %v1761 = vunpack.c.l.b16 %v1729
          %v1762 = vunpack.c.l.b16 %v1730
          %v1763 = vunpack.c.l.b16 %v1731
          %v1764 = vunpack.c.l.b16 %v1732
          %v1765 = vunpack.c.l.b16 %v1733
          %v1766 = vunpack.c.l.b16 %v1734
          %v1767 = vunpack.c.l.b16 %v1735
          %v1768 = vunpack.c.l.b16 %v1736
          %v1769 = vunpack.c.l.b16 %v1737
          %v1770 = vunpack.c.l.b16 %v1738
          %v1771 = vunpack.c.l.b16 %v1739
          %v1772 = vunpack.c.l.b16 %v1740
          %v1773 = vpack.c.b16 %v1758, %v1757
          %v1774 = vpack.c.b16 %v1760, %v1759
          %v1775 = vpack.c.b16 %v1762, %v1761
          %v1776 = vpack.c.b16 %v1764, %v1763
          %v1777 = vpack.c.b16 %v1766, %v1765
          %v1778 = vpack.c.b16 %v1768, %v1767
          %v1779 = vpack.c.b16 %v1770, %v1769
          %v1780 = vpack.c.b16 %v1772, %v1771
          %1789 = vmatprep.subr.bf16.mxu0 0
          %1790 = vmatpush1.bf16.msra.mxu0 %v1773
          %1791 = vmatprep.subr.bf16.mxu0 0
          %1792 = vmatpush1.bf16.msra.mxu0 %v1774
          %1793 = vmatprep.subr.bf16.mxu0 0
          %1794 = vmatpush1.bf16.msra.mxu0 %v1775
          %1795 = vmatprep.subr.bf16.mxu0 0
          %1796 = vmatpush1.bf16.msra.mxu0 %v1776
          %1797 = vmatprep.subr.bf16.mxu0 0
          %1798 = vmatpush1.bf16.msra.mxu0 %v1777
          %1799 = vmatprep.subr.bf16.mxu0 0
          %1800 = vmatpush1.bf16.msra.mxu0 %v1778
          %1801 = vmatprep.subr.bf16.mxu0 0
          %1802 = vmatpush1.bf16.msra.mxu0 %v1779
          %1803 = vmatprep.subr.bf16.mxu0 0
          %1804 = vmatpush1.bf16.msra.mxu0 %v1780
          %1805 = vmatprep.subr.bf16.mxu0 0
          %1806 = vmatpush1.bf16.msra.mxu0 0
          %1807 = vmatprep.subr.bf16.mxu0 0
          %1808 = vmatpush1.bf16.msra.mxu0 0
          %1809 = vmatprep.subr.bf16.mxu0 0
          %1810 = vmatpush1.bf16.msra.mxu0 0
          %1811 = vmatprep.subr.bf16.mxu0 0
          %1812 = vmatpush1.bf16.msra.mxu0 0
          %1813 = vmatprep.subr.bf16.mxu0 0
          %1814 = vmatpush1.bf16.msra.mxu0 0
          %1815 = vmatprep.subr.bf16.mxu0 0
          %1816 = vmatpush1.bf16.msra.mxu0 0
          %1817 = vmatprep.subr.bf16.mxu0 0
          %1818 = vmatpush1.bf16.msra.mxu0 0
          %1819 = vmatprep.subr.bf16.mxu0 0
          %1820 = vmatpush1.bf16.msra.mxu0 0
          %1821 = vmatprep.mubr.bf16.mxu0 0
          %1822 = vmatmul.mubr.bf16.gmra.mrb[0].mxu0 %v1723
          %v1823 = vpop.f32.mrb[0].mxu0
          %v1824 = vadd.f32 0.0, %v1823
          %v1825 = vpop.f32.mrb[0].mxu0
          %v1826 = vpop.f32.mrb[0].mxu0
          %v1827 = vadd.f32 0.0, %v1826
          %v1828 = vpop.f32.mrb[0].mxu0
          %1829 = vmatprep.mubr.bf16.mxu0 0
          %1830 = vmatmul.mubr.bf16.gmra.mrb[0].mxu0 %v1724
          %v1831 = vpop.f32.mrb[0].mxu0
          %v1832 = vadd.f32 0.0, %v1831
          %v1833 = vpop.f32.mrb[0].mxu0
          %v1834 = vpop.f32.mrb[0].mxu0
          %v1835 = vadd.f32 0.0, %v1834
          %v1836 = vpop.f32.mrb[0].mxu0
          %1837 = vdwg.mxu0
          %v1838 = vld [vmem:[#allocation14 + $0x6] ss:$0 sm:$0xff]
          %v1839 = vld [vmem:[#allocation14 + $0x7] ss:$0 sm:$0xff]
          %v1840 = vadd.f32 %v1824, %v1827
          %v1841 = vadd.f32 %v1840, %v1832
          %v1842 = vadd.f32 %v1841, %v1835
          %v1843 = vrot.slane %v1842, 4
          %v1844 = vadd.f32 %v1842, %v1843
          %v1845 = vrot.slane %v1844, 2
          %v1846 = vadd.f32 %v1844, %v1845
          %v1847 = vrot.slane %v1846, 1
          %v1848 = vadd.f32 %v1846, %v1847
          %v1849 = vmul.f32 %v1848, 0.03125
          %v1850 = vmul.f32 %v1824, %v1824
          %v1851 = vmul.f32 %v1827, %v1827
          %v1852 = vmul.f32 %v1832, %v1832
          %v1853 = vmul.f32 %v1835, %v1835
          %v1854 = vadd.f32 %v1850, %v1851
          %v1855 = vadd.f32 %v1854, %v1852
          %v1856 = vadd.f32 %v1855, %v1853
          %v1857 = vrot.slane %v1856, 4
          %v1858 = vadd.f32 %v1856, %v1857
          %v1859 = vrot.slane %v1858, 2
          %v1860 = vadd.f32 %v1858, %v1859
          %v1861 = vrot.slane %v1860, 1
          %v1862 = vadd.f32 %v1860, %v1861
          %v1863 = vmul.f32 %v1862, 0.03125
          %v1864 = vmul.f32 %v1849, %v1849
          %v1865 = vsub.f32 %v1863, %v1864
          %v1866 = vmax.f32 %v1865, 0.0
          %v1867 = vmul.f32 %v1838, 0.5
          %v1868 = vadd.f32 %v1866, 1e-05
          %v1869 = vrsqrt.pop %v1868
          %v1870 = vmul.f32 %v1867, %v1869
          %v1871 = vmul.f32 %v1839, 0.5
          %v1872 = vmul.f32 %v1849, %v1870
          %v1873 = vsub.f32 %v1871, %v1872
          %v1874 = vmul.f32 %v1824, %v1870
          %v1875 = vmul.f32 %v1827, %v1870
          %v1876 = vmul.f32 %v1832, %v1870
          %v1877 = vmul.f32 %v1835, %v1870
          %v1878 = vadd.f32 %v1874, %v1873
          %v1879 = vadd.f32 %v1875, %v1873
          %v1880 = vadd.f32 %v1876, %v1873
          %v1881 = vadd.f32 %v1877, %v1873
          %v1882 = vtanh.pop %v1878
          %v1883 = vtanh.pop %v1879
          %v1884 = vtanh.pop %v1880
          %v1885 = vtanh.pop %v1881
          %v1886 = vpack.c.bf16 %v1883, %v1882
          %v1887 = vpack.c.bf16 %v1885, %v1884
          %v1888 = vld [vmem:[#allocation12] sm:$0xf]
          %v1889 = vld [vmem:[#allocation12 + $0x4] sm:$0xf]
          %v1890 = vld [vmem:[#allocation12 + $0x8] sm:$0xf]
          %v1891 = vld [vmem:[#allocation12 + $0xc] sm:$0xf]
          %v1892 = vld [vmem:[#allocation12 + $0x10] sm:$0xf]
          %v1893 = vld [vmem:[#allocation12 + $0x14] sm:$0xf]
          %v1894 = vld [vmem:[#allocation12 + $0x18] sm:$0xf]
          %v1895 = vld [vmem:[#allocation12 + $0x1c] sm:$0xf]
          %v1896 = vld [vmem:[#allocation12 + $0x20] sm:$0xf]
          %v1897 = vld [vmem:[#allocation12 + $0x24] sm:$0xf]
          %v1898 = vld [vmem:[#allocation12 + $0x28] sm:$0xf]
          %v1899 = vld [vmem:[#allocation12 + $0x2c] sm:$0xf]
          %v1900 = vld [vmem:[#allocation12 + $0x30] sm:$0xf]
          %v1901 = vld [vmem:[#allocation12 + $0x34] sm:$0xf]
          %v1902 = vld [vmem:[#allocation12 + $0x38] sm:$0xf]
          %v1903 = vld [vmem:[#allocation12 + $0x3c] sm:$0xf]
          %v1904 = vld [vmem:[#allocation14 + $0x10] ss:$0 sm:$0xff]
          %v1921 = vunpack.c.l.b16 %v1888
          %v1922 = vunpack.c.l.b16 %v1889
          %v1923 = vunpack.c.l.b16 %v1890
          %v1924 = vunpack.c.l.b16 %v1891
          %v1925 = vunpack.c.l.b16 %v1892
          %v1926 = vunpack.c.l.b16 %v1893
          %v1927 = vunpack.c.l.b16 %v1894
          %v1928 = vunpack.c.l.b16 %v1895
          %v1929 = vunpack.c.l.b16 %v1896
          %v1930 = vunpack.c.l.b16 %v1897
          %v1931 = vunpack.c.l.b16 %v1898
          %v1932 = vunpack.c.l.b16 %v1899
          %v1933 = vunpack.c.l.b16 %v1900
          %v1934 = vunpack.c.l.b16 %v1901
          %v1935 = vunpack.c.l.b16 %v1902
          %v1936 = vunpack.c.l.b16 %v1903
          %v1937 = vpack.c.b16 %v1922, %v1921
          %v1938 = vpack.c.b16 %v1924, %v1923
          %v1939 = vpack.c.b16 %v1926, %v1925
          %v1940 = vpack.c.b16 %v1928, %v1927
          %v1941 = vpack.c.b16 %v1930, %v1929
          %v1942 = vpack.c.b16 %v1932, %v1931
          %v1943 = vpack.c.b16 %v1934, %v1933
          %v1944 = vpack.c.b16 %v1936, %v1935
          %1953 = vmatprep.subr.bf16.mxu0 0
          %1954 = vmatpush1.bf16.msra.mxu0 %v1937
          %1955 = vmatprep.subr.bf16.mxu0 0
          %1956 = vmatpush1.bf16.msra.mxu0 %v1938
          %1957 = vmatprep.subr.bf16.mxu0 0
          %1958 = vmatpush1.bf16.msra.mxu0 %v1939
          %1959 = vmatprep.subr.bf16.mxu0 0
          %1960 = vmatpush1.bf16.msra.mxu0 %v1940
          %1961 = vmatprep.subr.bf16.mxu0 0
          %1962 = vmatpush1.bf16.msra.mxu0 %v1941
          %1963 = vmatprep.subr.bf16.mxu0 0
          %1964 = vmatpush1.bf16.msra.mxu0 %v1942
          %1965 = vmatprep.subr.bf16.mxu0 0
          %1966 = vmatpush1.bf16.msra.mxu0 %v1943
          %1967 = vmatprep.subr.bf16.mxu0 0
          %1968 = vmatpush1.bf16.msra.mxu0 %v1944
          %1969 = vmatprep.subr.bf16.mxu0 0
          %1970 = vmatpush1.bf16.msra.mxu0 0
          %1971 = vmatprep.subr.bf16.mxu0 0
          %1972 = vmatpush1.bf16.msra.mxu0 0
          %1973 = vmatprep.subr.bf16.mxu0 0
          %1974 = vmatpush1.bf16.msra.mxu0 0
          %1975 = vmatprep.subr.bf16.mxu0 0
          %1976 = vmatpush1.bf16.msra.mxu0 0
          %1977 = vmatprep.subr.bf16.mxu0 0
          %1978 = vmatpush1.bf16.msra.mxu0 0
          %1979 = vmatprep.subr.bf16.mxu0 0
          %1980 = vmatpush1.bf16.msra.mxu0 0
          %1981 = vmatprep.subr.bf16.mxu0 0
          %1982 = vmatpush1.bf16.msra.mxu0 0
          %1983 = vmatprep.subr.bf16.mxu0 0
          %1984 = vmatpush1.bf16.msra.mxu0 0
          %1985 = vmatprep.mubr.bf16.mxu0 0
          %1986 = vmatmul.mubr.bf16.gmra.mrb[0].mxu0 %v1886
          %v1987 = vpop.f32.mrb[0].mxu0
          %v1988 = vadd.f32 %v1904, %v1987
          %v1989 = vpop.f32.mrb[0].mxu0
          %v1990 = vpop.f32.mrb[0].mxu0
          %v1991 = vadd.f32 %v1904, %v1990
          %v1992 = vpop.f32.mrb[0].mxu0
          %1993 = vmatprep.mubr.bf16.mxu0 0
          %1994 = vmatmul.mubr.bf16.gmra.mrb[0].mxu0 %v1887
          %v1995 = vpop.f32.mrb[0].mxu0
          %v1996 = vadd.f32 %v1904, %v1995
          %v1997 = vpop.f32.mrb[0].mxu0
          %v1998 = vpop.f32.mrb[0].mxu0
          %v1999 = vadd.f32 %v1904, %v1998
          %v2000 = vpop.f32.mrb[0].mxu0
          %2001 = vdwg.mxu0
          %2002 = vmax.xlane.f32.xlu0 %v1988
          %v2003 = vpop.xlane.xlu0 %2002
          %2004 = vmax.xlane.f32.xlu0 %v1991
          %v2005 = vpop.xlane.xlu0 %2004
          %2006 = vmax.xlane.f32.xlu0 %v1996
          %v2007 = vpop.xlane.xlu0 %2006
          %2008 = vmax.xlane.f32.xlu0 %v1999
          %v2009 = vpop.xlane.xlu0 %2008
          %v2010 = vsub.f32 %v1988, %v2003
          %v2011 = vsub.f32 %v1991, %v2005
          %v2012 = vsub.f32 %v1996, %v2007
          %v2013 = vsub.f32 %v1999, %v2009
          %v2014 = vmul.f32 %v2010, 1.442695
          %v2015 = vpow.pop %v2014
          %v2016 = vmul.f32 %v2011, 1.442695
          %v2017 = vpow.pop %v2016
          %v2018 = vmul.f32 %v2012, 1.442695
          %v2019 = vpow.pop %v2018
          %v2020 = vmul.f32 %v2013, 1.442695
          %v2021 = vpow.pop %v2020
          %2022 = vadd.xlane.f32.xlu0 %v2015
          %v2023 = vpop.xlane.xlu0 %2022
          %2024 = vadd.xlane.f32.xlu0 %v2017
          %v2025 = vpop.xlane.xlu0 %2024
          %2026 = vadd.xlane.f32.xlu0 %v2019
          %v2027 = vpop.xlane.xlu0 %2026
          %2028 = vadd.xlane.f32.xlu0 %v2021
          %v2029 = vpop.xlane.xlu0 %2028
          %v2030 = vlog2.pop %v2023
          %v2031 = vmul.f32 %v2030, 0.6931472
          %v2032 = vlog2.pop %v2025
          %v2033 = vmul.f32 %v2032, 0.6931472
          %v2034 = vlog2.pop %v2027
          %v2035 = vmul.f32 %v2034, 0.6931472
          %v2036 = vlog2.pop %v2029
          %v2037 = vmul.f32 %v2036, 0.6931472
          %v2038 = vsub.f32 %v2010, %v2031
          %v2039 = vsub.f32 %v2011, %v2033
          %v2040 = vsub.f32 %v2012, %v2035
          %v2041 = vsub.f32 %v2013, %v2037
          %2042 = vst [vmem:[#allocation15] sm:$0xff] %v2038
          %2043 = vst [vmem:[#allocation15 + $0x8] sm:$0xff] %v2039
          %2044 = vst [vmem:[#allocation15 + $0x10] sm:$0xff] %v2040
          %2045 = vst [vmem:[#allocation15 + $0x18] sm:$0xff] %v2041
        $region80: #{tpu_custom_call.1} parent=47 // pred_fallthru
          _
        // Predicated region
        $region81: #{tpu_custom_call.1} parent=47 // pred_check
          %p2046 = pneg %p190
        $region82: #{tpu_custom_call.1} parent=47 // pred_check_branch
          %2048 = sbr.rel (%p2046) target = $region84
        $region83: #{tpu_custom_call.1} parent=47 // pred_region
          %s2050 = ssub.s32 512, 512
          %2051 = vsyncadd [#allocation5], %s2050
          %s2052 = sshll.u32 [#allocation15], 4
          %s2053 = int_to_ptr.vmem [resolvable:$true] %s2052
          %2058 = dma.vmem_to_hbm [thread:$0]  %s2053, 512, %s7, [#allocation5], 128, 128, 8
        $region84: #{tpu_custom_call.1} parent=47 // pred_fallthru
          _
        // Predicated region
        $region85: #{tpu_custom_call.1} parent=47 // pred_check
          %p2059 = pneg %p190
        $region86: #{tpu_custom_call.1} parent=47 // pred_check_branch
          %2061 = sbr.rel (%p2059) target = $region88
        $region87: #{tpu_custom_call.1} parent=47 // pred_region
          %2062 = dma.done [#allocation5], 512
        $region88: #{tpu_custom_call.1} parent=47 // pred_fallthru
          _
      $region48: #{tpu_custom_call.1} parent=5 // pred_fallthru
        _
      %p2063 = scmp.le.s32.totalorder 2, %s20
      // Predicated region
      $region89: #{tpu_custom_call.1} parent=5 // pred_check
        %p2064 = pneg %p2063
      $region90: #{tpu_custom_call.1} parent=5 // pred_check_branch
        %2066 = sbr.rel (%p2064) target = $region92
      $region91: #{tpu_custom_call.1} parent=5 // pred_region
        %s2067 = ssub.s32 %s20, 2
      $region92: #{tpu_custom_call.1} parent=5 // pred_fallthru
        _
    $region6: #{tpu_custom_call.1} parent=1 // loop_footer
      %s24 = sadd.s32 1, %s20
    $region7: #{tpu_custom_call.1} parent=1 // loop_footer_branch
      %19 = sbr.rel target = $region3
    $region8: #{tpu_custom_call.1} parent=1 // loop_exit
      _
    %2068 = vsyncpa [#allocation4], 1
    %s2069 = scalar_lea.sflag [#allocation4], 1
    %2070 = vsyncpa %s2069, 1
    %2071 = vsyncpa [#allocation7], 1
    %2072 = vsyncpa [#allocation10], 1
    %2073 = vsyncpa [#allocation13], 1
    %2074 = vsyncpa [#allocation5], 1
    %s2075 = scalar_lea.sflag [#allocation5], 1
    %2076 = vsyncpa %s2075, 1

</llo_original>
